<compile_context>
chip_gen: v6e
topology: v6e:2x2x1
jax: 0.10.0
libtpu: 0.0.40
codegen_flags: <defaults>
</compile_context>

<pallas_src>
import jax
import jax.numpy as jnp
from jax import lax
from jax.experimental import pallas as pl
from jax.experimental.pallas import tpu as pltpu  # noqa: F401  (kept for TPU-specific tweaks)


def sentence_attention_kernel(
    len_ref,     # (B, 1)      int32  sentence lengths
    x_ref,       # (T*B, Din)  f32    time-major flattened inputs (row j = t*B + b)
    wih_ref,     # (Din, 6H)   bf16   both directions' input->gate weights, merged gate order
    bih_ref,     # (1, 6H)     f32
    whh_ref,     # (2H, 6H)    bf16   block-diagonal hidden->gate weights (fwd rows 0:H)
    bhh_ref,     # (1, 6H)     f32
    watt_ref,    # (2H, A)     bf16   attention linear (transposed, fwd/bwd fused)
    batt_ref,    # (1, A)      f32
    ctx_ref,     # (1, A)      f32    context vector as a row
    wcls_ref,    # (2H, C)     bf16   classifier (transposed, fwd/bwd fused)
    bcls_ref,    # (1, C)      f32
    gmask_ref,   # (1, 6H)     f32    1.0 on forward-gate columns of the merged order
    logits_ref,  # (B, C)      f32 out
    attw_ref,    # (B, T)      f32 out (lane-dense attention weights)
):
    TB = x_ref.shape[0]
    B = len_ref.shape[0]
    T = TB // B
    H2, H6 = whh_ref.shape          # 2H, 6H
    H = H2 // 2
    H4 = 2 * H2                     # 4H
    A = ctx_ref.shape[1]
    C = bcls_ref.shape[1]

    len_col = len_ref[...]                                            # (B, 1) int32

    # ---- hoisted input->gates projection for BOTH directions: one bf16 MXU pass,
    #      biases folded in.  Row j = time j//B, batch j%B; merged gate column order. ----
    gi_all = (jnp.dot(x_ref[...].astype(jnp.bfloat16), wih_ref[...],
                      preferred_element_type=jnp.float32)
              + bih_ref[...])                                          # (T*B, 6H) f32

    # Hoisted constants / broadcasts (kept out of the recurrent chain).
    whh = whh_ref[...]                                                 # (2H, 6H) bf16
    bhh = jnp.broadcast_to(bhh_ref[...], (B, H6))
    gsel = jnp.broadcast_to(gmask_ref[...] != 0.0, (B, H6))            # fwd-gate columns
    hmask = lax.broadcasted_iota(jnp.int32, (B, H2), 1) < H            # fwd-state lanes
    watt = watt_ref[...]
    batt = jnp.broadcast_to(batt_ref[...], (B, A))
    ctx = ctx_ref[...]
    wcls = wcls_ref[...]
    bcls = jnp.broadcast_to(bcls_ref[...], (B, C))

    # ---- merged fwd+bwd GRU recurrence (fully unrolled): ONE (B,2H)@(2H,6H) bf16 matmul,
    #      ONE fused sigmoid (r & z) and ONE tanh per step; fwd at t=i, bwd at t=T-1-i. ----
    h_cat = jnp.zeros((B, H2), jnp.float32)                            # [h_f | h_b]
    out_fwd = [None] * T   # (B, 2H) blocks per time t: fwd output in lanes [0:H), rest 0
    out_bwd = [None] * T   # (B, 2H) blocks per time t: bwd output in lanes [H:2H), rest 0
    for i in range(T):
        t_f = i
        t_b = T - 1 - i
        gi_f = gi_all[t_f * B:(t_f + 1) * B, :]
        gi_b = gi_all[t_b * B:(t_b + 1) * B, :]
        gi = jnp.where(gsel, gi_f, gi_b)            # fwd cols from t_f, bwd cols from t_b

        gh = jnp.dot(h_cat.astype(jnp.bfloat16), whh,
                     preferred_element_type=jnp.float32) + bhh         # (B, 6H)

        rz = jax.nn.sigmoid(gi[:, 0:H4] + gh[:, 0:H4])                 # r & z in one call
        r = rz[:, 0:H2]
        z = rz[:, H2:H4]
        n = jnp.tanh(gi[:, H4:H6] + r * gh[:, H4:H6])
        h_new = (1.0 - z) * n + z * h_cat                              # (B, 2H)

        # packed-sequence masking: fwd lanes valid iff t_f < len, bwd lanes iff t_b < len
        tval = jnp.where(hmask, t_f, t_b)                              # (B, 2H) int32
        valid = tval < len_col                                         # (B, 2H) bool
        out_state = jnp.where(valid, h_new, 0.0)                       # padded steps -> 0
        out_fwd[t_f] = jnp.where(hmask, out_state, 0.0)
        out_bwd[t_b] = jnp.where(hmask, 0.0, out_state)
        h_cat = jnp.where(valid, h_new, h_cat)                         # carry update

    # ---- per-timestep attention scores + classifier contributions.  These are off the
    #      recurrent chain; the classifier matmul is reassociated ahead of the softmax so
    #      nothing behind the softmax touches the MXU. ----
    t_iota = lax.broadcasted_iota(jnp.int32, (B, T), 1)
    s_bt = jnp.zeros((B, T), jnp.float32)
    cls_blocks = [None] * T
    for t in range(T):
        blk = out_fwd[t] + out_bwd[t]                                  # (B, 2H) bi-GRU out
        blk16 = blk.astype(jnp.bfloat16)
        att_t = jnp.tanh(jnp.dot(blk16, watt, preferred_element_type=jnp.float32) + batt)
        score_t = jnp.sum(att_t * ctx, axis=-1, keepdims=True)         # (B, 1) VPU + lane reduce
        s_bt = jnp.where(t_iota == t, score_t, s_bt)                   # lane-dense (B, T)
        cls_blocks[t] = jnp.dot(blk16, wcls, preferred_element_type=jnp.float32)  # (B, C)

    # ---- masked softmax over sentences, lane-dense (B, T) layout ----
    s_bt = jnp.where(t_iota < len_col, s_bt, -jnp.inf)
    m = jnp.maximum(jnp.max(s_bt, axis=1, keepdims=True), jnp.float32(-1e30))
    p = jnp.exp(s_bt - m)
    denom = jnp.maximum(jnp.sum(p, axis=1, keepdims=True), jnp.float32(1e-30))
    inv = pl.reciprocal(denom, approx=True)
    inv = inv * (2.0 - denom * inv)        # one Newton step: full f32 accuracy, EUP slot
    w_bt = p * inv                                                     # (B, T)
    attw_ref[...] = w_bt

    # ---- attention pooling folded into the precomputed classifier blocks:
    #      logits = b_cls + sum_t w[:, t] * (state_t @ W_cls)  (pure VPU tail) ----
    acc = bcls
    for t in range(T):
        acc = acc + w_bt[:, t:t + 1] * cls_blocks[t]
    logits_ref[...] = acc


def prepare_sentence_attention(params):
    """One-time weight fusion / layout prep (hoisted out of the per-call hot path).

    Merged gate column order is [r_f r_b | z_f z_b | n_f n_b].  Returns MXU-ready constants:
      wih (Din, 6H) bf16, whh (2H, 6H) bf16 block-diagonal, transposed bf16 attention /
      classifier weights, f32 biases, and the forward-gate column mask.
    """
    H = params["w_hh_f"].shape[1]

    def merge_cols(f, b):   # f, b: (rows, 3H) -> (rows, 6H) in merged gate order
        return jnp.concatenate(
            [f[:, 0:H], b[:, 0:H],
             f[:, H:2 * H], b[:, H:2 * H],
             f[:, 2 * H:3 * H], b[:, 2 * H:3 * H]], axis=1)

    wih = merge_cols(params["w_ih_f"].T, params["w_ih_b"].T).astype(jnp.bfloat16)
    bih = merge_cols(params["b_ih_f"].reshape(1, -1), params["b_ih_b"].reshape(1, -1))
    whf = params["w_hh_f"].T                     # (H, 3H)
    whb = params["w_hh_b"].T
    whh = jnp.concatenate([
        merge_cols(whf, jnp.zeros_like(whf)),    # rows 0:H  -> forward gate columns only
        merge_cols(jnp.zeros_like(whb), whb),    # rows H:2H -> backward gate columns only
    ], axis=0).astype(jnp.bfloat16)              # (2H, 6H) block-diagonal
    bhh = merge_cols(params["b_hh_f"].reshape(1, -1), params["b_hh_b"].reshape(1, -1))
    gmask = merge_cols(jnp.ones((1, 3 * H), jnp.float32),
                       jnp.zeros((1, 3 * H), jnp.float32))
    return dict(
        wih=wih, bih=bih, whh=whh, bhh=bhh,
        watt=params["w_att"].T.astype(jnp.bfloat16),
        batt=params["b_att"].reshape(1, -1),
        ctx=params["w_ctx"].reshape(1, -1),
        wcls=params["w_cls"].T.astype(jnp.bfloat16),
        bcls=params["b_cls"].reshape(1, -1),
        gmask=gmask,
    )


@jax.jit
def sentence_attention_forward(sentence_vectors, sentence_lengths, prep):
    """Per-call wrapper: only the tiny time-major flatten happens here; all weight prep is
    done once in prepare_sentence_attention()."""
    B, T, Din = sentence_vectors.shape
    C = prep["bcls"].shape[1]

    x_flat = jnp.swapaxes(sentence_vectors, 0, 1).reshape(T * B, Din).astype(jnp.float32)
    len_col = sentence_lengths.reshape(B, 1).astype(jnp.int32)

    # TODO(synk): for large batches add a batch-tile grid with
    #             dimension_semantics=("parallel",) (2 TensorCores on v7x) and size per-tile
    #             VMEM against v7x's 64 MiB; at B=2 a single gridless program is optimal.
    logits, attw = pl.pallas_call(
        sentence_attention_kernel,
        out_shape=(jax.ShapeDtypeStruct((B, C), jnp.float32),
                   jax.ShapeDtypeStruct((B, T), jnp.float32)),
    )(len_col, x_flat, prep["wih"], prep["bih"], prep["whh"], prep["bhh"],
      prep["watt"], prep["batt"], prep["ctx"], prep["wcls"], prep["bcls"], prep["gmask"])
    return logits, attw


# ----------------------- pure-JAX reference (for correctness check) -----------------------
def reference_forward(x, lengths, params):
    B, T, _ = x.shape
    H = params["w_hh_f"].shape[1]
    hp = jax.lax.Precision.HIGHEST

    def cell(x_t, h, w_ih, w_hh, b_ih, b_hh):
        gi = jnp.dot(x_t, w_ih.T, precision=hp) + b_ih
        gh = jnp.dot(h, w_hh.T, precision=hp) + b_hh
        r = jax.nn.sigmoid(gi[:, :H] + gh[:, :H])
        z = jax.nn.sigmoid(gi[:, H:2 * H] + gh[:, H:2 * H])
        n = jnp.tanh(gi[:, 2 * H:] + r * gh[:, 2 * H:])
        return (1.0 - z) * n + z * h

    fwd_out = []
    h = jnp.zeros((B, H), jnp.float32)
    for t in range(T):
        h_new = cell(x[:, t], h, params["w_ih_f"], params["w_hh_f"],
                     params["b_ih_f"], params["b_hh_f"])
        valid = (t < lengths)[:, None]
        fwd_out.append(jnp.where(valid, h_new, 0.0))
        h = jnp.where(valid, h_new, h)

    bwd_out = [None] * T
    h = jnp.zeros((B, H), jnp.float32)
    for t in range(T - 1, -1, -1):
        h_new = cell(x[:, t], h, params["w_ih_b"], params["w_hh_b"],
                     params["b_ih_b"], params["b_hh_b"])
        valid = (t < lengths)[:, None]
        bwd_out[t] = jnp.where(valid, h_new, 0.0)
        h = jnp.where(valid, h_new, h)

    out = jnp.concatenate([jnp.stack(fwd_out, 1), jnp.stack(bwd_out, 1)], axis=-1)  # (B,T,2H)
    att = jnp.tanh(jnp.dot(out, params["w_att"].T, precision=hp) + params["b_att"])
    scores = jnp.dot(att, params["w_ctx"].T, precision=hp)[..., 0]                  # (B,T)
    mask = jnp.arange(T)[None, :] < lengths[:, None]
    scores = jnp.where(mask, scores, -jnp.inf)
    w = jax.nn.softmax(scores, axis=1)
    doc = jnp.sum(out * w[:, :, None], axis=1)
    logits = jnp.dot(doc, params["w_cls"].T, precision=hp) + params["b_cls"]
    return logits, w


def init_params(key, word_hidden, sent_hidden, att_dim, n_classes):
    din = 2 * word_hidden
    H = sent_hidden
    keys = jax.random.split(key, 13)

    def u(k_, shape, scale):
        return jax.random.uniform(k_, shape, jnp.float32, -scale, scale)

    kg = 1.0 / float(jnp.sqrt(H))
    ka = 1.0 / float(jnp.sqrt(2 * H))
    kc = 1.0 / float(jnp.sqrt(att_dim))
    return dict(
        w_ih_f=u(keys[0], (3 * H, din), kg), w_hh_f=u(keys[1], (3 * H, H), kg),
        b_ih_f=u(keys[2], (3 * H,), kg),     b_hh_f=u(keys[3], (3 * H,), kg),
        w_ih_b=u(keys[4], (3 * H, din), kg), w_hh_b=u(keys[5], (3 * H, H), kg),
        b_ih_b=u(keys[6], (3 * H,), kg),     b_hh_b=u(keys[7], (3 * H,), kg),
        w_att=u(keys[8], (att_dim, 2 * H), ka), b_att=u(keys[9], (att_dim,), ka),
        w_ctx=u(keys[10], (1, att_dim), kc),
        w_cls=u(keys[11], (n_classes, 2 * H), ka), b_cls=u(keys[12], (n_classes,), ka),
    )


if __name__ == "__main__":
    word_gru_hidden_units = 16      # input dim = 2*16 = 32
    sentence_gru_hidden_units = 16  # output feature dim = 2*16 = 32
    sentence_attention_dim = 32
    number_of_classes = 4
    B, T = 2, 8

    key = jax.random.PRNGKey(0)
    kx, kp = jax.random.split(key)
    sentence_vectors = jax.random.normal(kx, (B, T, 2 * word_gru_hidden_units), jnp.float32)
    sentence_lengths = jnp.array([8, 5], jnp.int32)   # max length == T (pad_packed_sequence)

    params = init_params(kp, word_gru_hidden_units, sentence_gru_hidden_units,
                         sentence_attention_dim, number_of_classes)
    prep = prepare_sentence_attention(params)         # one-time (hoisted) weight prep

    logits, attw = sentence_attention_forward(sentence_vectors, sentence_lengths, prep)
    jax.block_until_ready((logits, attw))

    ref_logits, ref_attw = reference_forward(sentence_vectors, sentence_lengths, params)
    assert logits.shape == (B, number_of_classes) and attw.shape == (B, T)
    # bf16 MXU operands (per perf review) with f32 accumulation: compare at 2e-2.
    assert bool(jnp.allclose(logits, ref_logits, atol=2e-2, rtol=2e-2))
    assert bool(jnp.allclose(attw, ref_attw, atol=2e-2, rtol=2e-2))

    print("KERNEL_OK")
</pallas_src>

<mosaic_0001>
module attributes {stable_mosaic.version = 11 : i64} {
  func.func @sentence_attention_kernel(%arg0: memref<2x1xi32, #tpu.memory_space<vmem>>, %arg1: memref<16x32xf32, #tpu.memory_space<vmem>>, %arg2: memref<32x96xbf16, #tpu.memory_space<vmem>>, %arg3: memref<1x96xf32, #tpu.memory_space<vmem>>, %arg4: memref<32x96xbf16, #tpu.memory_space<vmem>>, %arg5: memref<1x96xf32, #tpu.memory_space<vmem>>, %arg6: memref<32x32xbf16, #tpu.memory_space<vmem>>, %arg7: memref<1x32xf32, #tpu.memory_space<vmem>>, %arg8: memref<1x32xf32, #tpu.memory_space<vmem>>, %arg9: memref<32x4xbf16, #tpu.memory_space<vmem>>, %arg10: memref<1x4xf32, #tpu.memory_space<vmem>>, %arg11: memref<1x96xf32, #tpu.memory_space<vmem>>, %arg12: memref<2x4xf32, #tpu.memory_space<vmem>>, %arg13: memref<2x8xf32, #tpu.memory_space<vmem>>) attributes {dimension_semantics = [], scalar_prefetch = 0 : i64, scratch_operands = 0 : i64, tpu.core_type = #tpu.core_type<tc>} {
    %c0 = arith.constant 0 : index
    %c0_0 = arith.constant 0 : index
    %0 = vector.load %arg0[%c0, %c0_0] : memref<2x1xi32, #tpu.memory_space<vmem>>, vector<2x1xi32>
    %c0_1 = arith.constant 0 : index
    %c0_2 = arith.constant 0 : index
    %1 = vector.load %arg1[%c0_1, %c0_2] : memref<16x32xf32, #tpu.memory_space<vmem>>, vector<16x32xf32>
    %2 = arith.truncf %1 : vector<16x32xf32> to vector<16x32xbf16>
    %c0_3 = arith.constant 0 : index
    %c0_4 = arith.constant 0 : index
    %3 = vector.load %arg2[%c0_3, %c0_4] : memref<32x96xbf16, #tpu.memory_space<vmem>>, vector<32x96xbf16>
    %cst = arith.constant dense<0.000000e+00> : vector<16x96xf32>
    %4 = tpu.matmul %2, %3, %cst {dimension_numbers = #tpu.dot_dimension_numbers<[1], [0], [0], [1], [0, 0, 1, 1], [], []>} : vector<16x32xbf16>, vector<32x96xbf16>, vector<16x96xf32> -> vector<16x96xf32>
    %c0_5 = arith.constant 0 : index
    %c0_6 = arith.constant 0 : index
    %5 = vector.load %arg3[%c0_5, %c0_6] : memref<1x96xf32, #tpu.memory_space<vmem>>, vector<1x96xf32>
    %6 = vector.broadcast %5 : vector<1x96xf32> to vector<16x96xf32>
    %7 = arith.addf %4, %6 : vector<16x96xf32>
    %c0_7 = arith.constant 0 : index
    %c0_8 = arith.constant 0 : index
    %8 = vector.load %arg4[%c0_7, %c0_8] : memref<32x96xbf16, #tpu.memory_space<vmem>>, vector<32x96xbf16>
    %c0_9 = arith.constant 0 : index
    %c0_10 = arith.constant 0 : index
    %9 = vector.load %arg5[%c0_9, %c0_10] : memref<1x96xf32, #tpu.memory_space<vmem>>, vector<1x96xf32>
    %10 = vector.shape_cast %9 : vector<1x96xf32> to vector<1x96xf32>
    %11 = vector.broadcast %10 : vector<1x96xf32> to vector<2x96xf32>
    %c0_11 = arith.constant 0 : index
    %c0_12 = arith.constant 0 : index
    %12 = vector.load %arg11[%c0_11, %c0_12] : memref<1x96xf32, #tpu.memory_space<vmem>>, vector<1x96xf32>
    %cst_13 = arith.constant 0.000000e+00 : f32
    %13 = vector.broadcast %cst_13 : f32 to vector<1x96xf32>
    %14 = arith.cmpf one, %12, %13 : vector<1x96xf32>
    %15 = vector.shape_cast %14 : vector<1x96xi1> to vector<1x96xi1>
    %16 = vector.broadcast %15 : vector<1x96xi1> to vector<2x96xi1>
    %17 = tpu.iota {dimensions = array<i32: 1>} : vector<2x32xi32>
    %c16_i32 = arith.constant 16 : i32
    %18 = vector.broadcast %c16_i32 : i32 to vector<2x32xi32>
    %19 = arith.cmpi slt, %17, %18 : vector<2x32xi32>
    %c0_14 = arith.constant 0 : index
    %c0_15 = arith.constant 0 : index
    %20 = vector.load %arg6[%c0_14, %c0_15] : memref<32x32xbf16, #tpu.memory_space<vmem>>, vector<32x32xbf16>
    %c0_16 = arith.constant 0 : index
    %c0_17 = arith.constant 0 : index
    %21 = vector.load %arg7[%c0_16, %c0_17] : memref<1x32xf32, #tpu.memory_space<vmem>>, vector<1x32xf32>
    %22 = vector.shape_cast %21 : vector<1x32xf32> to vector<1x32xf32>
    %23 = vector.broadcast %22 : vector<1x32xf32> to vector<2x32xf32>
    %c0_18 = arith.constant 0 : index
    %c0_19 = arith.constant 0 : index
    %24 = vector.load %arg8[%c0_18, %c0_19] : memref<1x32xf32, #tpu.memory_space<vmem>>, vector<1x32xf32>
    %c0_20 = arith.constant 0 : index
    %c0_21 = arith.constant 0 : index
    %25 = vector.load %arg9[%c0_20, %c0_21] : memref<32x4xbf16, #tpu.memory_space<vmem>>, vector<32x4xbf16>
    %c0_22 = arith.constant 0 : index
    %c0_23 = arith.constant 0 : index
    %26 = vector.load %arg10[%c0_22, %c0_23] : memref<1x4xf32, #tpu.memory_space<vmem>>, vector<1x4xf32>
    %27 = vector.shape_cast %26 : vector<1x4xf32> to vector<1x4xf32>
    %28 = vector.broadcast %27 : vector<1x4xf32> to vector<2x4xf32>
    %cst_24 = arith.constant 0.000000e+00 : f32
    %29 = vector.broadcast %cst_24 : f32 to vector<2x32xf32>
    %30 = vector.extract_strided_slice %7 {offsets = [0, 0], sizes = [2, 96], strides = [1, 1]} : vector<16x96xf32> to vector<2x96xf32>
    %31 = vector.extract_strided_slice %7 {offsets = [14, 0], sizes = [2, 96], strides = [1, 1]} : vector<16x96xf32> to vector<2x96xf32>
    %32 = arith.select %16, %30, %31 : vector<2x96xi1>, vector<2x96xf32>
    %33 = arith.truncf %29 : vector<2x32xf32> to vector<2x32xbf16>
    %cst_25 = arith.constant dense<0.000000e+00> : vector<2x96xf32>
    %34 = tpu.matmul %33, %8, %cst_25 {dimension_numbers = #tpu.dot_dimension_numbers<[1], [0], [0], [1], [0, 0, 1, 1], [], []>} : vector<2x32xbf16>, vector<32x96xbf16>, vector<2x96xf32> -> vector<2x96xf32>
    %35 = arith.addf %34, %11 : vector<2x96xf32>
    %36 = vector.extract_strided_slice %32 {offsets = [0, 0], sizes = [2, 64], strides = [1, 1]} : vector<2x96xf32> to vector<2x64xf32>
    %37 = vector.extract_strided_slice %35 {offsets = [0, 0], sizes = [2, 64], strides = [1, 1]} : vector<2x96xf32> to vector<2x64xf32>
    %38 = arith.addf %36, %37 : vector<2x64xf32>
    %39 = arith.negf %38 : vector<2x64xf32>
    %40 = math.exp %39 : vector<2x64xf32>
    %cst_26 = arith.constant 1.000000e+00 : f32
    %41 = vector.broadcast %cst_26 : f32 to vector<2x64xf32>
    %42 = arith.addf %41, %40 : vector<2x64xf32>
    %43 = arith.divf %41, %42 : vector<2x64xf32>
    %44 = vector.extract_strided_slice %43 {offsets = [0, 0], sizes = [2, 32], strides = [1, 1]} : vector<2x64xf32> to vector<2x32xf32>
    %45 = vector.extract_strided_slice %43 {offsets = [0, 32], sizes = [2, 32], strides = [1, 1]} : vector<2x64xf32> to vector<2x32xf32>
    %46 = vector.extract_strided_slice %32 {offsets = [0, 64], sizes = [2, 32], strides = [1, 1]} : vector<2x96xf32> to vector<2x32xf32>
    %47 = vector.extract_strided_slice %35 {offsets = [0, 64], sizes = [2, 32], strides = [1, 1]} : vector<2x96xf32> to vector<2x32xf32>
    %48 = arith.mulf %44, %47 : vector<2x32xf32>
    %49 = arith.addf %46, %48 : vector<2x32xf32>
    %50 = math.tanh %49 : vector<2x32xf32>
    %cst_27 = arith.constant 1.000000e+00 : f32
    %51 = vector.broadcast %cst_27 : f32 to vector<2x32xf32>
    %52 = arith.subf %51, %45 : vector<2x32xf32>
    %53 = arith.mulf %52, %50 : vector<2x32xf32>
    %54 = arith.mulf %45, %29 : vector<2x32xf32>
    %55 = arith.addf %53, %54 : vector<2x32xf32>
    %c0_i32 = arith.constant 0 : i32
    %c7_i32 = arith.constant 7 : i32
    %56 = vector.broadcast %c0_i32 : i32 to vector<2x32xi32>
    %57 = vector.broadcast %c7_i32 : i32 to vector<2x32xi32>
    %58 = arith.select %19, %56, %57 : vector<2x32xi1>, vector<2x32xi32>
    %59 = vector.broadcast %0 : vector<2x1xi32> to vector<2x32xi32>
    %60 = arith.cmpi slt, %58, %59 : vector<2x32xi32>
    %cst_28 = arith.constant 0.000000e+00 : f32
    %61 = vector.broadcast %cst_28 : f32 to vector<2x32xf32>
    %62 = arith.select %60, %55, %61 : vector<2x32xi1>, vector<2x32xf32>
    %cst_29 = arith.constant 0.000000e+00 : f32
    %63 = vector.broadcast %cst_29 : f32 to vector<2x32xf32>
    %64 = arith.select %19, %62, %63 : vector<2x32xi1>, vector<2x32xf32>
    %cst_30 = arith.constant 0.000000e+00 : f32
    %65 = vector.broadcast %cst_30 : f32 to vector<2x32xf32>
    %66 = arith.select %19, %65, %62 : vector<2x32xi1>, vector<2x32xf32>
    %67 = arith.select %60, %55, %29 : vector<2x32xi1>, vector<2x32xf32>
    %68 = vector.extract_strided_slice %7 {offsets = [2, 0], sizes = [2, 96], strides = [1, 1]} : vector<16x96xf32> to vector<2x96xf32>
    %69 = vector.extract_strided_slice %7 {offsets = [12, 0], sizes = [2, 96], strides = [1, 1]} : vector<16x96xf32> to vector<2x96xf32>
    %70 = arith.select %16, %68, %69 : vector<2x96xi1>, vector<2x96xf32>
    %71 = arith.truncf %67 : vector<2x32xf32> to vector<2x32xbf16>
    %cst_31 = arith.constant dense<0.000000e+00> : vector<2x96xf32>
    %72 = tpu.matmul %71, %8, %cst_31 {dimension_numbers = #tpu.dot_dimension_numbers<[1], [0], [0], [1], [0, 0, 1, 1], [], []>} : vector<2x32xbf16>, vector<32x96xbf16>, vector<2x96xf32> -> vector<2x96xf32>
    %73 = arith.addf %72, %11 : vector<2x96xf32>
    %74 = vector.extract_strided_slice %70 {offsets = [0, 0], sizes = [2, 64], strides = [1, 1]} : vector<2x96xf32> to vector<2x64xf32>
    %75 = vector.extract_strided_slice %73 {offsets = [0, 0], sizes = [2, 64], strides = [1, 1]} : vector<2x96xf32> to vector<2x64xf32>
    %76 = arith.addf %74, %75 : vector<2x64xf32>
    %77 = arith.negf %76 : vector<2x64xf32>
    %78 = math.exp %77 : vector<2x64xf32>
    %cst_32 = arith.constant 1.000000e+00 : f32
    %79 = vector.broadcast %cst_32 : f32 to vector<2x64xf32>
    %80 = arith.addf %79, %78 : vector<2x64xf32>
    %81 = arith.divf %79, %80 : vector<2x64xf32>
    %82 = vector.extract_strided_slice %81 {offsets = [0, 0], sizes = [2, 32], strides = [1, 1]} : vector<2x64xf32> to vector<2x32xf32>
    %83 = vector.extract_strided_slice %81 {offsets = [0, 32], sizes = [2, 32], strides = [1, 1]} : vector<2x64xf32> to vector<2x32xf32>
    %84 = vector.extract_strided_slice %70 {offsets = [0, 64], sizes = [2, 32], strides = [1, 1]} : vector<2x96xf32> to vector<2x32xf32>
    %85 = vector.extract_strided_slice %73 {offsets = [0, 64], sizes = [2, 32], strides = [1, 1]} : vector<2x96xf32> to vector<2x32xf32>
    %86 = arith.mulf %82, %85 : vector<2x32xf32>
    %87 = arith.addf %84, %86 : vector<2x32xf32>
    %88 = math.tanh %87 : vector<2x32xf32>
    %cst_33 = arith.constant 1.000000e+00 : f32
    %89 = vector.broadcast %cst_33 : f32 to vector<2x32xf32>
    %90 = arith.subf %89, %83 : vector<2x32xf32>
    %91 = arith.mulf %90, %88 : vector<2x32xf32>
    %92 = arith.mulf %83, %67 : vector<2x32xf32>
    %93 = arith.addf %91, %92 : vector<2x32xf32>
    %c1_i32 = arith.constant 1 : i32
    %c6_i32 = arith.constant 6 : i32
    %94 = vector.broadcast %c1_i32 : i32 to vector<2x32xi32>
    %95 = vector.broadcast %c6_i32 : i32 to vector<2x32xi32>
    %96 = arith.select %19, %94, %95 : vector<2x32xi1>, vector<2x32xi32>
    %97 = vector.broadcast %0 : vector<2x1xi32> to vector<2x32xi32>
    %98 = arith.cmpi slt, %96, %97 : vector<2x32xi32>
    %cst_34 = arith.constant 0.000000e+00 : f32
    %99 = vector.broadcast %cst_34 : f32 to vector<2x32xf32>
    %100 = arith.select %98, %93, %99 : vector<2x32xi1>, vector<2x32xf32>
    %cst_35 = arith.constant 0.000000e+00 : f32
    %101 = vector.broadcast %cst_35 : f32 to vector<2x32xf32>
    %102 = arith.select %19, %100, %101 : vector<2x32xi1>, vector<2x32xf32>
    %cst_36 = arith.constant 0.000000e+00 : f32
    %103 = vector.broadcast %cst_36 : f32 to vector<2x32xf32>
    %104 = arith.select %19, %103, %100 : vector<2x32xi1>, vector<2x32xf32>
    %105 = arith.select %98, %93, %67 : vector<2x32xi1>, vector<2x32xf32>
    %106 = vector.extract_strided_slice %7 {offsets = [4, 0], sizes = [2, 96], strides = [1, 1]} : vector<16x96xf32> to vector<2x96xf32>
    %107 = vector.extract_strided_slice %7 {offsets = [10, 0], sizes = [2, 96], strides = [1, 1]} : vector<16x96xf32> to vector<2x96xf32>
    %108 = arith.select %16, %106, %107 : vector<2x96xi1>, vector<2x96xf32>
    %109 = arith.truncf %105 : vector<2x32xf32> to vector<2x32xbf16>
    %cst_37 = arith.constant dense<0.000000e+00> : vector<2x96xf32>
    %110 = tpu.matmul %109, %8, %cst_37 {dimension_numbers = #tpu.dot_dimension_numbers<[1], [0], [0], [1], [0, 0, 1, 1], [], []>} : vector<2x32xbf16>, vector<32x96xbf16>, vector<2x96xf32> -> vector<2x96xf32>
    %111 = arith.addf %110, %11 : vector<2x96xf32>
    %112 = vector.extract_strided_slice %108 {offsets = [0, 0], sizes = [2, 64], strides = [1, 1]} : vector<2x96xf32> to vector<2x64xf32>
    %113 = vector.extract_strided_slice %111 {offsets = [0, 0], sizes = [2, 64], strides = [1, 1]} : vector<2x96xf32> to vector<2x64xf32>
    %114 = arith.addf %112, %113 : vector<2x64xf32>
    %115 = arith.negf %114 : vector<2x64xf32>
    %116 = math.exp %115 : vector<2x64xf32>
    %cst_38 = arith.constant 1.000000e+00 : f32
    %117 = vector.broadcast %cst_38 : f32 to vector<2x64xf32>
    %118 = arith.addf %117, %116 : vector<2x64xf32>
    %119 = arith.divf %117, %118 : vector<2x64xf32>
    %120 = vector.extract_strided_slice %119 {offsets = [0, 0], sizes = [2, 32], strides = [1, 1]} : vector<2x64xf32> to vector<2x32xf32>
    %121 = vector.extract_strided_slice %119 {offsets = [0, 32], sizes = [2, 32], strides = [1, 1]} : vector<2x64xf32> to vector<2x32xf32>
    %122 = vector.extract_strided_slice %108 {offsets = [0, 64], sizes = [2, 32], strides = [1, 1]} : vector<2x96xf32> to vector<2x32xf32>
    %123 = vector.extract_strided_slice %111 {offsets = [0, 64], sizes = [2, 32], strides = [1, 1]} : vector<2x96xf32> to vector<2x32xf32>
    %124 = arith.mulf %120, %123 : vector<2x32xf32>
    %125 = arith.addf %122, %124 : vector<2x32xf32>
    %126 = math.tanh %125 : vector<2x32xf32>
    %cst_39 = arith.constant 1.000000e+00 : f32
    %127 = vector.broadcast %cst_39 : f32 to vector<2x32xf32>
    %128 = arith.subf %127, %121 : vector<2x32xf32>
    %129 = arith.mulf %128, %126 : vector<2x32xf32>
    %130 = arith.mulf %121, %105 : vector<2x32xf32>
    %131 = arith.addf %129, %130 : vector<2x32xf32>
    %c2_i32 = arith.constant 2 : i32
    %c5_i32 = arith.constant 5 : i32
    %132 = vector.broadcast %c2_i32 : i32 to vector<2x32xi32>
    %133 = vector.broadcast %c5_i32 : i32 to vector<2x32xi32>
    %134 = arith.select %19, %132, %133 : vector<2x32xi1>, vector<2x32xi32>
    %135 = vector.broadcast %0 : vector<2x1xi32> to vector<2x32xi32>
    %136 = arith.cmpi slt, %134, %135 : vector<2x32xi32>
    %cst_40 = arith.constant 0.000000e+00 : f32
    %137 = vector.broadcast %cst_40 : f32 to vector<2x32xf32>
    %138 = arith.select %136, %131, %137 : vector<2x32xi1>, vector<2x32xf32>
    %cst_41 = arith.constant 0.000000e+00 : f32
    %139 = vector.broadcast %cst_41 : f32 to vector<2x32xf32>
    %140 = arith.select %19, %138, %139 : vector<2x32xi1>, vector<2x32xf32>
    %cst_42 = arith.constant 0.000000e+00 : f32
    %141 = vector.broadcast %cst_42 : f32 to vector<2x32xf32>
    %142 = arith.select %19, %141, %138 : vector<2x32xi1>, vector<2x32xf32>
    %143 = arith.select %136, %131, %105 : vector<2x32xi1>, vector<2x32xf32>
    %144 = vector.extract_strided_slice %7 {offsets = [6, 0], sizes = [2, 96], strides = [1, 1]} : vector<16x96xf32> to vector<2x96xf32>
    %145 = vector.extract_strided_slice %7 {offsets = [8, 0], sizes = [2, 96], strides = [1, 1]} : vector<16x96xf32> to vector<2x96xf32>
    %146 = arith.select %16, %144, %145 : vector<2x96xi1>, vector<2x96xf32>
    %147 = arith.truncf %143 : vector<2x32xf32> to vector<2x32xbf16>
    %cst_43 = arith.constant dense<0.000000e+00> : vector<2x96xf32>
    %148 = tpu.matmul %147, %8, %cst_43 {dimension_numbers = #tpu.dot_dimension_numbers<[1], [0], [0], [1], [0, 0, 1, 1], [], []>} : vector<2x32xbf16>, vector<32x96xbf16>, vector<2x96xf32> -> vector<2x96xf32>
    %149 = arith.addf %148, %11 : vector<2x96xf32>
    %150 = vector.extract_strided_slice %146 {offsets = [0, 0], sizes = [2, 64], strides = [1, 1]} : vector<2x96xf32> to vector<2x64xf32>
    %151 = vector.extract_strided_slice %149 {offsets = [0, 0], sizes = [2, 64], strides = [1, 1]} : vector<2x96xf32> to vector<2x64xf32>
    %152 = arith.addf %150, %151 : vector<2x64xf32>
    %153 = arith.negf %152 : vector<2x64xf32>
    %154 = math.exp %153 : vector<2x64xf32>
    %cst_44 = arith.constant 1.000000e+00 : f32
    %155 = vector.broadcast %cst_44 : f32 to vector<2x64xf32>
    %156 = arith.addf %155, %154 : vector<2x64xf32>
    %157 = arith.divf %155, %156 : vector<2x64xf32>
    %158 = vector.extract_strided_slice %157 {offsets = [0, 0], sizes = [2, 32], strides = [1, 1]} : vector<2x64xf32> to vector<2x32xf32>
    %159 = vector.extract_strided_slice %157 {offsets = [0, 32], sizes = [2, 32], strides = [1, 1]} : vector<2x64xf32> to vector<2x32xf32>
    %160 = vector.extract_strided_slice %146 {offsets = [0, 64], sizes = [2, 32], strides = [1, 1]} : vector<2x96xf32> to vector<2x32xf32>
    %161 = vector.extract_strided_slice %149 {offsets = [0, 64], sizes = [2, 32], strides = [1, 1]} : vector<2x96xf32> to vector<2x32xf32>
    %162 = arith.mulf %158, %161 : vector<2x32xf32>
    %163 = arith.addf %160, %162 : vector<2x32xf32>
    %164 = math.tanh %163 : vector<2x32xf32>
    %cst_45 = arith.constant 1.000000e+00 : f32
    %165 = vector.broadcast %cst_45 : f32 to vector<2x32xf32>
    %166 = arith.subf %165, %159 : vector<2x32xf32>
    %167 = arith.mulf %166, %164 : vector<2x32xf32>
    %168 = arith.mulf %159, %143 : vector<2x32xf32>
    %169 = arith.addf %167, %168 : vector<2x32xf32>
    %c3_i32 = arith.constant 3 : i32
    %c4_i32 = arith.constant 4 : i32
    %170 = vector.broadcast %c3_i32 : i32 to vector<2x32xi32>
    %171 = vector.broadcast %c4_i32 : i32 to vector<2x32xi32>
    %172 = arith.select %19, %170, %171 : vector<2x32xi1>, vector<2x32xi32>
    %173 = vector.broadcast %0 : vector<2x1xi32> to vector<2x32xi32>
    %174 = arith.cmpi slt, %172, %173 : vector<2x32xi32>
    %cst_46 = arith.constant 0.000000e+00 : f32
    %175 = vector.broadcast %cst_46 : f32 to vector<2x32xf32>
    %176 = arith.select %174, %169, %175 : vector<2x32xi1>, vector<2x32xf32>
    %cst_47 = arith.constant 0.000000e+00 : f32
    %177 = vector.broadcast %cst_47 : f32 to vector<2x32xf32>
    %178 = arith.select %19, %176, %177 : vector<2x32xi1>, vector<2x32xf32>
    %cst_48 = arith.constant 0.000000e+00 : f32
    %179 = vector.broadcast %cst_48 : f32 to vector<2x32xf32>
    %180 = arith.select %19, %179, %176 : vector<2x32xi1>, vector<2x32xf32>
    %181 = arith.select %174, %169, %143 : vector<2x32xi1>, vector<2x32xf32>
    %182 = vector.extract_strided_slice %7 {offsets = [8, 0], sizes = [2, 96], strides = [1, 1]} : vector<16x96xf32> to vector<2x96xf32>
    %183 = vector.extract_strided_slice %7 {offsets = [6, 0], sizes = [2, 96], strides = [1, 1]} : vector<16x96xf32> to vector<2x96xf32>
    %184 = arith.select %16, %182, %183 : vector<2x96xi1>, vector<2x96xf32>
    %185 = arith.truncf %181 : vector<2x32xf32> to vector<2x32xbf16>
    %cst_49 = arith.constant dense<0.000000e+00> : vector<2x96xf32>
    %186 = tpu.matmul %185, %8, %cst_49 {dimension_numbers = #tpu.dot_dimension_numbers<[1], [0], [0], [1], [0, 0, 1, 1], [], []>} : vector<2x32xbf16>, vector<32x96xbf16>, vector<2x96xf32> -> vector<2x96xf32>
    %187 = arith.addf %186, %11 : vector<2x96xf32>
    %188 = vector.extract_strided_slice %184 {offsets = [0, 0], sizes = [2, 64], strides = [1, 1]} : vector<2x96xf32> to vector<2x64xf32>
    %189 = vector.extract_strided_slice %187 {offsets = [0, 0], sizes = [2, 64], strides = [1, 1]} : vector<2x96xf32> to vector<2x64xf32>
    %190 = arith.addf %188, %189 : vector<2x64xf32>
    %191 = arith.negf %190 : vector<2x64xf32>
    %192 = math.exp %191 : vector<2x64xf32>
    %cst_50 = arith.constant 1.000000e+00 : f32
    %193 = vector.broadcast %cst_50 : f32 to vector<2x64xf32>
    %194 = arith.addf %193, %192 : vector<2x64xf32>
    %195 = arith.divf %193, %194 : vector<2x64xf32>
    %196 = vector.extract_strided_slice %195 {offsets = [0, 0], sizes = [2, 32], strides = [1, 1]} : vector<2x64xf32> to vector<2x32xf32>
    %197 = vector.extract_strided_slice %195 {offsets = [0, 32], sizes = [2, 32], strides = [1, 1]} : vector<2x64xf32> to vector<2x32xf32>
    %198 = vector.extract_strided_slice %184 {offsets = [0, 64], sizes = [2, 32], strides = [1, 1]} : vector<2x96xf32> to vector<2x32xf32>
    %199 = vector.extract_strided_slice %187 {offsets = [0, 64], sizes = [2, 32], strides = [1, 1]} : vector<2x96xf32> to vector<2x32xf32>
    %200 = arith.mulf %196, %199 : vector<2x32xf32>
    %201 = arith.addf %198, %200 : vector<2x32xf32>
    %202 = math.tanh %201 : vector<2x32xf32>
    %cst_51 = arith.constant 1.000000e+00 : f32
    %203 = vector.broadcast %cst_51 : f32 to vector<2x32xf32>
    %204 = arith.subf %203, %197 : vector<2x32xf32>
    %205 = arith.mulf %204, %202 : vector<2x32xf32>
    %206 = arith.mulf %197, %181 : vector<2x32xf32>
    %207 = arith.addf %205, %206 : vector<2x32xf32>
    %c4_i32_52 = arith.constant 4 : i32
    %c3_i32_53 = arith.constant 3 : i32
    %208 = vector.broadcast %c4_i32_52 : i32 to vector<2x32xi32>
    %209 = vector.broadcast %c3_i32_53 : i32 to vector<2x32xi32>
    %210 = arith.select %19, %208, %209 : vector<2x32xi1>, vector<2x32xi32>
    %211 = vector.broadcast %0 : vector<2x1xi32> to vector<2x32xi32>
    %212 = arith.cmpi slt, %210, %211 : vector<2x32xi32>
    %cst_54 = arith.constant 0.000000e+00 : f32
    %213 = vector.broadcast %cst_54 : f32 to vector<2x32xf32>
    %214 = arith.select %212, %207, %213 : vector<2x32xi1>, vector<2x32xf32>
    %cst_55 = arith.constant 0.000000e+00 : f32
    %215 = vector.broadcast %cst_55 : f32 to vector<2x32xf32>
    %216 = arith.select %19, %214, %215 : vector<2x32xi1>, vector<2x32xf32>
    %cst_56 = arith.constant 0.000000e+00 : f32
    %217 = vector.broadcast %cst_56 : f32 to vector<2x32xf32>
    %218 = arith.select %19, %217, %214 : vector<2x32xi1>, vector<2x32xf32>
    %219 = arith.select %212, %207, %181 : vector<2x32xi1>, vector<2x32xf32>
    %220 = vector.extract_strided_slice %7 {offsets = [10, 0], sizes = [2, 96], strides = [1, 1]} : vector<16x96xf32> to vector<2x96xf32>
    %221 = vector.extract_strided_slice %7 {offsets = [4, 0], sizes = [2, 96], strides = [1, 1]} : vector<16x96xf32> to vector<2x96xf32>
    %222 = arith.select %16, %220, %221 : vector<2x96xi1>, vector<2x96xf32>
    %223 = arith.truncf %219 : vector<2x32xf32> to vector<2x32xbf16>
    %cst_57 = arith.constant dense<0.000000e+00> : vector<2x96xf32>
    %224 = tpu.matmul %223, %8, %cst_57 {dimension_numbers = #tpu.dot_dimension_numbers<[1], [0], [0], [1], [0, 0, 1, 1], [], []>} : vector<2x32xbf16>, vector<32x96xbf16>, vector<2x96xf32> -> vector<2x96xf32>
    %225 = arith.addf %224, %11 : vector<2x96xf32>
    %226 = vector.extract_strided_slice %222 {offsets = [0, 0], sizes = [2, 64], strides = [1, 1]} : vector<2x96xf32> to vector<2x64xf32>
    %227 = vector.extract_strided_slice %225 {offsets = [0, 0], sizes = [2, 64], strides = [1, 1]} : vector<2x96xf32> to vector<2x64xf32>
    %228 = arith.addf %226, %227 : vector<2x64xf32>
    %229 = arith.negf %228 : vector<2x64xf32>
    %230 = math.exp %229 : vector<2x64xf32>
    %cst_58 = arith.constant 1.000000e+00 : f32
    %231 = vector.broadcast %cst_58 : f32 to vector<2x64xf32>
    %232 = arith.addf %231, %230 : vector<2x64xf32>
    %233 = arith.divf %231, %232 : vector<2x64xf32>
    %234 = vector.extract_strided_slice %233 {offsets = [0, 0], sizes = [2, 32], strides = [1, 1]} : vector<2x64xf32> to vector<2x32xf32>
    %235 = vector.extract_strided_slice %233 {offsets = [0, 32], sizes = [2, 32], strides = [1, 1]} : vector<2x64xf32> to vector<2x32xf32>
    %236 = vector.extract_strided_slice %222 {offsets = [0, 64], sizes = [2, 32], strides = [1, 1]} : vector<2x96xf32> to vector<2x32xf32>
    %237 = vector.extract_strided_slice %225 {offsets = [0, 64], sizes = [2, 32], strides = [1, 1]} : vector<2x96xf32> to vector<2x32xf32>
    %238 = arith.mulf %234, %237 : vector<2x32xf32>
    %239 = arith.addf %236, %238 : vector<2x32xf32>
    %240 = math.tanh %239 : vector<2x32xf32>
    %cst_59 = arith.constant 1.000000e+00 : f32
    %241 = vector.broadcast %cst_59 : f32 to vector<2x32xf32>
    %242 = arith.subf %241, %235 : vector<2x32xf32>
    %243 = arith.mulf %242, %240 : vector<2x32xf32>
    %244 = arith.mulf %235, %219 : vector<2x32xf32>
    %245 = arith.addf %243, %244 : vector<2x32xf32>
    %c5_i32_60 = arith.constant 5 : i32
    %c2_i32_61 = arith.constant 2 : i32
    %246 = vector.broadcast %c5_i32_60 : i32 to vector<2x32xi32>
    %247 = vector.broadcast %c2_i32_61 : i32 to vector<2x32xi32>
    %248 = arith.select %19, %246, %247 : vector<2x32xi1>, vector<2x32xi32>
    %249 = vector.broadcast %0 : vector<2x1xi32> to vector<2x32xi32>
    %250 = arith.cmpi slt, %248, %249 : vector<2x32xi32>
    %cst_62 = arith.constant 0.000000e+00 : f32
    %251 = vector.broadcast %cst_62 : f32 to vector<2x32xf32>
    %252 = arith.select %250, %245, %251 : vector<2x32xi1>, vector<2x32xf32>
    %cst_63 = arith.constant 0.000000e+00 : f32
    %253 = vector.broadcast %cst_63 : f32 to vector<2x32xf32>
    %254 = arith.select %19, %252, %253 : vector<2x32xi1>, vector<2x32xf32>
    %cst_64 = arith.constant 0.000000e+00 : f32
    %255 = vector.broadcast %cst_64 : f32 to vector<2x32xf32>
    %256 = arith.select %19, %255, %252 : vector<2x32xi1>, vector<2x32xf32>
    %257 = arith.select %250, %245, %219 : vector<2x32xi1>, vector<2x32xf32>
    %258 = vector.extract_strided_slice %7 {offsets = [12, 0], sizes = [2, 96], strides = [1, 1]} : vector<16x96xf32> to vector<2x96xf32>
    %259 = vector.extract_strided_slice %7 {offsets = [2, 0], sizes = [2, 96], strides = [1, 1]} : vector<16x96xf32> to vector<2x96xf32>
    %260 = arith.select %16, %258, %259 : vector<2x96xi1>, vector<2x96xf32>
    %261 = arith.truncf %257 : vector<2x32xf32> to vector<2x32xbf16>
    %cst_65 = arith.constant dense<0.000000e+00> : vector<2x96xf32>
    %262 = tpu.matmul %261, %8, %cst_65 {dimension_numbers = #tpu.dot_dimension_numbers<[1], [0], [0], [1], [0, 0, 1, 1], [], []>} : vector<2x32xbf16>, vector<32x96xbf16>, vector<2x96xf32> -> vector<2x96xf32>
    %263 = arith.addf %262, %11 : vector<2x96xf32>
    %264 = vector.extract_strided_slice %260 {offsets = [0, 0], sizes = [2, 64], strides = [1, 1]} : vector<2x96xf32> to vector<2x64xf32>
    %265 = vector.extract_strided_slice %263 {offsets = [0, 0], sizes = [2, 64], strides = [1, 1]} : vector<2x96xf32> to vector<2x64xf32>
    %266 = arith.addf %264, %265 : vector<2x64xf32>
    %267 = arith.negf %266 : vector<2x64xf32>
    %268 = math.exp %267 : vector<2x64xf32>
    %cst_66 = arith.constant 1.000000e+00 : f32
    %269 = vector.broadcast %cst_66 : f32 to vector<2x64xf32>
    %270 = arith.addf %269, %268 : vector<2x64xf32>
    %271 = arith.divf %269, %270 : vector<2x64xf32>
    %272 = vector.extract_strided_slice %271 {offsets = [0, 0], sizes = [2, 32], strides = [1, 1]} : vector<2x64xf32> to vector<2x32xf32>
    %273 = vector.extract_strided_slice %271 {offsets = [0, 32], sizes = [2, 32], strides = [1, 1]} : vector<2x64xf32> to vector<2x32xf32>
    %274 = vector.extract_strided_slice %260 {offsets = [0, 64], sizes = [2, 32], strides = [1, 1]} : vector<2x96xf32> to vector<2x32xf32>
    %275 = vector.extract_strided_slice %263 {offsets = [0, 64], sizes = [2, 32], strides = [1, 1]} : vector<2x96xf32> to vector<2x32xf32>
    %276 = arith.mulf %272, %275 : vector<2x32xf32>
    %277 = arith.addf %274, %276 : vector<2x32xf32>
    %278 = math.tanh %277 : vector<2x32xf32>
    %cst_67 = arith.constant 1.000000e+00 : f32
    %279 = vector.broadcast %cst_67 : f32 to vector<2x32xf32>
    %280 = arith.subf %279, %273 : vector<2x32xf32>
    %281 = arith.mulf %280, %278 : vector<2x32xf32>
    %282 = arith.mulf %273, %257 : vector<2x32xf32>
    %283 = arith.addf %281, %282 : vector<2x32xf32>
    %c6_i32_68 = arith.constant 6 : i32
    %c1_i32_69 = arith.constant 1 : i32
    %284 = vector.broadcast %c6_i32_68 : i32 to vector<2x32xi32>
    %285 = vector.broadcast %c1_i32_69 : i32 to vector<2x32xi32>
    %286 = arith.select %19, %284, %285 : vector<2x32xi1>, vector<2x32xi32>
    %287 = vector.broadcast %0 : vector<2x1xi32> to vector<2x32xi32>
    %288 = arith.cmpi slt, %286, %287 : vector<2x32xi32>
    %cst_70 = arith.constant 0.000000e+00 : f32
    %289 = vector.broadcast %cst_70 : f32 to vector<2x32xf32>
    %290 = arith.select %288, %283, %289 : vector<2x32xi1>, vector<2x32xf32>
    %cst_71 = arith.constant 0.000000e+00 : f32
    %291 = vector.broadcast %cst_71 : f32 to vector<2x32xf32>
    %292 = arith.select %19, %290, %291 : vector<2x32xi1>, vector<2x32xf32>
    %cst_72 = arith.constant 0.000000e+00 : f32
    %293 = vector.broadcast %cst_72 : f32 to vector<2x32xf32>
    %294 = arith.select %19, %293, %290 : vector<2x32xi1>, vector<2x32xf32>
    %295 = arith.select %288, %283, %257 : vector<2x32xi1>, vector<2x32xf32>
    %296 = vector.extract_strided_slice %7 {offsets = [14, 0], sizes = [2, 96], strides = [1, 1]} : vector<16x96xf32> to vector<2x96xf32>
    %297 = vector.extract_strided_slice %7 {offsets = [0, 0], sizes = [2, 96], strides = [1, 1]} : vector<16x96xf32> to vector<2x96xf32>
    %298 = arith.select %16, %296, %297 : vector<2x96xi1>, vector<2x96xf32>
    %299 = arith.truncf %295 : vector<2x32xf32> to vector<2x32xbf16>
    %cst_73 = arith.constant dense<0.000000e+00> : vector<2x96xf32>
    %300 = tpu.matmul %299, %8, %cst_73 {dimension_numbers = #tpu.dot_dimension_numbers<[1], [0], [0], [1], [0, 0, 1, 1], [], []>} : vector<2x32xbf16>, vector<32x96xbf16>, vector<2x96xf32> -> vector<2x96xf32>
    %301 = arith.addf %300, %11 : vector<2x96xf32>
    %302 = vector.extract_strided_slice %298 {offsets = [0, 0], sizes = [2, 64], strides = [1, 1]} : vector<2x96xf32> to vector<2x64xf32>
    %303 = vector.extract_strided_slice %301 {offsets = [0, 0], sizes = [2, 64], strides = [1, 1]} : vector<2x96xf32> to vector<2x64xf32>
    %304 = arith.addf %302, %303 : vector<2x64xf32>
    %305 = arith.negf %304 : vector<2x64xf32>
    %306 = math.exp %305 : vector<2x64xf32>
    %cst_74 = arith.constant 1.000000e+00 : f32
    %307 = vector.broadcast %cst_74 : f32 to vector<2x64xf32>
    %308 = arith.addf %307, %306 : vector<2x64xf32>
    %309 = arith.divf %307, %308 : vector<2x64xf32>
    %310 = vector.extract_strided_slice %309 {offsets = [0, 0], sizes = [2, 32], strides = [1, 1]} : vector<2x64xf32> to vector<2x32xf32>
    %311 = vector.extract_strided_slice %309 {offsets = [0, 32], sizes = [2, 32], strides = [1, 1]} : vector<2x64xf32> to vector<2x32xf32>
    %312 = vector.extract_strided_slice %298 {offsets = [0, 64], sizes = [2, 32], strides = [1, 1]} : vector<2x96xf32> to vector<2x32xf32>
    %313 = vector.extract_strided_slice %301 {offsets = [0, 64], sizes = [2, 32], strides = [1, 1]} : vector<2x96xf32> to vector<2x32xf32>
    %314 = arith.mulf %310, %313 : vector<2x32xf32>
    %315 = arith.addf %312, %314 : vector<2x32xf32>
    %316 = math.tanh %315 : vector<2x32xf32>
    %cst_75 = arith.constant 1.000000e+00 : f32
    %317 = vector.broadcast %cst_75 : f32 to vector<2x32xf32>
    %318 = arith.subf %317, %311 : vector<2x32xf32>
    %319 = arith.mulf %318, %316 : vector<2x32xf32>
    %320 = arith.mulf %311, %295 : vector<2x32xf32>
    %321 = arith.addf %319, %320 : vector<2x32xf32>
    %c7_i32_76 = arith.constant 7 : i32
    %c0_i32_77 = arith.constant 0 : i32
    %322 = vector.broadcast %c7_i32_76 : i32 to vector<2x32xi32>
    %323 = vector.broadcast %c0_i32_77 : i32 to vector<2x32xi32>
    %324 = arith.select %19, %322, %323 : vector<2x32xi1>, vector<2x32xi32>
    %325 = vector.broadcast %0 : vector<2x1xi32> to vector<2x32xi32>
    %326 = arith.cmpi slt, %324, %325 : vector<2x32xi32>
    %cst_78 = arith.constant 0.000000e+00 : f32
    %327 = vector.broadcast %cst_78 : f32 to vector<2x32xf32>
    %328 = arith.select %326, %321, %327 : vector<2x32xi1>, vector<2x32xf32>
    %cst_79 = arith.constant 0.000000e+00 : f32
    %329 = vector.broadcast %cst_79 : f32 to vector<2x32xf32>
    %330 = arith.select %19, %328, %329 : vector<2x32xi1>, vector<2x32xf32>
    %cst_80 = arith.constant 0.000000e+00 : f32
    %331 = vector.broadcast %cst_80 : f32 to vector<2x32xf32>
    %332 = arith.select %19, %331, %328 : vector<2x32xi1>, vector<2x32xf32>
    %333 = tpu.iota {dimensions = array<i32: 1>} : vector<2x8xi32>
    %cst_81 = arith.constant 0.000000e+00 : f32
    %334 = vector.broadcast %cst_81 : f32 to vector<2x8xf32>
    %335 = arith.addf %64, %332 : vector<2x32xf32>
    %336 = arith.truncf %335 : vector<2x32xf32> to vector<2x32xbf16>
    %cst_82 = arith.constant dense<0.000000e+00> : vector<2x32xf32>
    %337 = tpu.matmul %336, %20, %cst_82 {dimension_numbers = #tpu.dot_dimension_numbers<[1], [0], [0], [1], [0, 0, 1, 1], [], []>} : vector<2x32xbf16>, vector<32x32xbf16>, vector<2x32xf32> -> vector<2x32xf32>
    %338 = arith.addf %337, %23 : vector<2x32xf32>
    %339 = math.tanh %338 : vector<2x32xf32>
    %340 = vector.broadcast %24 : vector<1x32xf32> to vector<2x32xf32>
    %341 = arith.mulf %339, %340 : vector<2x32xf32>
    %cst_83 = arith.constant dense<0.000000e+00> : vector<2xf32>
    %342 = vector.multi_reduction <add>, %341, %cst_83 [1] : vector<2x32xf32> to vector<2xf32>
    %343 = vector.shape_cast %342 : vector<2xf32> to vector<2x1xf32>
    %c0_i32_84 = arith.constant 0 : i32
    %344 = vector.broadcast %c0_i32_84 : i32 to vector<2x8xi32>
    %345 = arith.cmpi eq, %333, %344 : vector<2x8xi32>
    %346 = vector.shape_cast %343 : vector<2x1xf32> to vector<2x1xf32>
    %347 = vector.broadcast %346 : vector<2x1xf32> to vector<2x8xf32>
    %348 = arith.select %345, %347, %334 : vector<2x8xi1>, vector<2x8xf32>
    %cst_85 = arith.constant dense<0.000000e+00> : vector<2x4xf32>
    %349 = tpu.matmul %336, %25, %cst_85 {dimension_numbers = #tpu.dot_dimension_numbers<[1], [0], [0], [1], [0, 0, 1, 1], [], []>} : vector<2x32xbf16>, vector<32x4xbf16>, vector<2x4xf32> -> vector<2x4xf32>
    %350 = arith.addf %102, %294 : vector<2x32xf32>
    %351 = arith.truncf %350 : vector<2x32xf32> to vector<2x32xbf16>
    %cst_86 = arith.constant dense<0.000000e+00> : vector<2x32xf32>
    %352 = tpu.matmul %351, %20, %cst_86 {dimension_numbers = #tpu.dot_dimension_numbers<[1], [0], [0], [1], [0, 0, 1, 1], [], []>} : vector<2x32xbf16>, vector<32x32xbf16>, vector<2x32xf32> -> vector<2x32xf32>
    %353 = arith.addf %352, %23 : vector<2x32xf32>
    %354 = math.tanh %353 : vector<2x32xf32>
    %355 = vector.broadcast %24 : vector<1x32xf32> to vector<2x32xf32>
    %356 = arith.mulf %354, %355 : vector<2x32xf32>
    %cst_87 = arith.constant dense<0.000000e+00> : vector<2xf32>
    %357 = vector.multi_reduction <add>, %356, %cst_87 [1] : vector<2x32xf32> to vector<2xf32>
    %358 = vector.shape_cast %357 : vector<2xf32> to vector<2x1xf32>
    %c1_i32_88 = arith.constant 1 : i32
    %359 = vector.broadcast %c1_i32_88 : i32 to vector<2x8xi32>
    %360 = arith.cmpi eq, %333, %359 : vector<2x8xi32>
    %361 = vector.shape_cast %358 : vector<2x1xf32> to vector<2x1xf32>
    %362 = vector.broadcast %361 : vector<2x1xf32> to vector<2x8xf32>
    %363 = arith.select %360, %362, %348 : vector<2x8xi1>, vector<2x8xf32>
    %cst_89 = arith.constant dense<0.000000e+00> : vector<2x4xf32>
    %364 = tpu.matmul %351, %25, %cst_89 {dimension_numbers = #tpu.dot_dimension_numbers<[1], [0], [0], [1], [0, 0, 1, 1], [], []>} : vector<2x32xbf16>, vector<32x4xbf16>, vector<2x4xf32> -> vector<2x4xf32>
    %365 = arith.addf %140, %256 : vector<2x32xf32>
    %366 = arith.truncf %365 : vector<2x32xf32> to vector<2x32xbf16>
    %cst_90 = arith.constant dense<0.000000e+00> : vector<2x32xf32>
    %367 = tpu.matmul %366, %20, %cst_90 {dimension_numbers = #tpu.dot_dimension_numbers<[1], [0], [0], [1], [0, 0, 1, 1], [], []>} : vector<2x32xbf16>, vector<32x32xbf16>, vector<2x32xf32> -> vector<2x32xf32>
    %368 = arith.addf %367, %23 : vector<2x32xf32>
    %369 = math.tanh %368 : vector<2x32xf32>
    %370 = vector.broadcast %24 : vector<1x32xf32> to vector<2x32xf32>
    %371 = arith.mulf %369, %370 : vector<2x32xf32>
    %cst_91 = arith.constant dense<0.000000e+00> : vector<2xf32>
    %372 = vector.multi_reduction <add>, %371, %cst_91 [1] : vector<2x32xf32> to vector<2xf32>
    %373 = vector.shape_cast %372 : vector<2xf32> to vector<2x1xf32>
    %c2_i32_92 = arith.constant 2 : i32
    %374 = vector.broadcast %c2_i32_92 : i32 to vector<2x8xi32>
    %375 = arith.cmpi eq, %333, %374 : vector<2x8xi32>
    %376 = vector.shape_cast %373 : vector<2x1xf32> to vector<2x1xf32>
    %377 = vector.broadcast %376 : vector<2x1xf32> to vector<2x8xf32>
    %378 = arith.select %375, %377, %363 : vector<2x8xi1>, vector<2x8xf32>
    %cst_93 = arith.constant dense<0.000000e+00> : vector<2x4xf32>
    %379 = tpu.matmul %366, %25, %cst_93 {dimension_numbers = #tpu.dot_dimension_numbers<[1], [0], [0], [1], [0, 0, 1, 1], [], []>} : vector<2x32xbf16>, vector<32x4xbf16>, vector<2x4xf32> -> vector<2x4xf32>
    %380 = arith.addf %178, %218 : vector<2x32xf32>
    %381 = arith.truncf %380 : vector<2x32xf32> to vector<2x32xbf16>
    %cst_94 = arith.constant dense<0.000000e+00> : vector<2x32xf32>
    %382 = tpu.matmul %381, %20, %cst_94 {dimension_numbers = #tpu.dot_dimension_numbers<[1], [0], [0], [1], [0, 0, 1, 1], [], []>} : vector<2x32xbf16>, vector<32x32xbf16>, vector<2x32xf32> -> vector<2x32xf32>
    %383 = arith.addf %382, %23 : vector<2x32xf32>
    %384 = math.tanh %383 : vector<2x32xf32>
    %385 = vector.broadcast %24 : vector<1x32xf32> to vector<2x32xf32>
    %386 = arith.mulf %384, %385 : vector<2x32xf32>
    %cst_95 = arith.constant dense<0.000000e+00> : vector<2xf32>
    %387 = vector.multi_reduction <add>, %386, %cst_95 [1] : vector<2x32xf32> to vector<2xf32>
    %388 = vector.shape_cast %387 : vector<2xf32> to vector<2x1xf32>
    %c3_i32_96 = arith.constant 3 : i32
    %389 = vector.broadcast %c3_i32_96 : i32 to vector<2x8xi32>
    %390 = arith.cmpi eq, %333, %389 : vector<2x8xi32>
    %391 = vector.shape_cast %388 : vector<2x1xf32> to vector<2x1xf32>
    %392 = vector.broadcast %391 : vector<2x1xf32> to vector<2x8xf32>
    %393 = arith.select %390, %392, %378 : vector<2x8xi1>, vector<2x8xf32>
    %cst_97 = arith.constant dense<0.000000e+00> : vector<2x4xf32>
    %394 = tpu.matmul %381, %25, %cst_97 {dimension_numbers = #tpu.dot_dimension_numbers<[1], [0], [0], [1], [0, 0, 1, 1], [], []>} : vector<2x32xbf16>, vector<32x4xbf16>, vector<2x4xf32> -> vector<2x4xf32>
    %395 = arith.addf %216, %180 : vector<2x32xf32>
    %396 = arith.truncf %395 : vector<2x32xf32> to vector<2x32xbf16>
    %cst_98 = arith.constant dense<0.000000e+00> : vector<2x32xf32>
    %397 = tpu.matmul %396, %20, %cst_98 {dimension_numbers = #tpu.dot_dimension_numbers<[1], [0], [0], [1], [0, 0, 1, 1], [], []>} : vector<2x32xbf16>, vector<32x32xbf16>, vector<2x32xf32> -> vector<2x32xf32>
    %398 = arith.addf %397, %23 : vector<2x32xf32>
    %399 = math.tanh %398 : vector<2x32xf32>
    %400 = vector.broadcast %24 : vector<1x32xf32> to vector<2x32xf32>
    %401 = arith.mulf %399, %400 : vector<2x32xf32>
    %cst_99 = arith.constant dense<0.000000e+00> : vector<2xf32>
    %402 = vector.multi_reduction <add>, %401, %cst_99 [1] : vector<2x32xf32> to vector<2xf32>
    %403 = vector.shape_cast %402 : vector<2xf32> to vector<2x1xf32>
    %c4_i32_100 = arith.constant 4 : i32
    %404 = vector.broadcast %c4_i32_100 : i32 to vector<2x8xi32>
    %405 = arith.cmpi eq, %333, %404 : vector<2x8xi32>
    %406 = vector.shape_cast %403 : vector<2x1xf32> to vector<2x1xf32>
    %407 = vector.broadcast %406 : vector<2x1xf32> to vector<2x8xf32>
    %408 = arith.select %405, %407, %393 : vector<2x8xi1>, vector<2x8xf32>
    %cst_101 = arith.constant dense<0.000000e+00> : vector<2x4xf32>
    %409 = tpu.matmul %396, %25, %cst_101 {dimension_numbers = #tpu.dot_dimension_numbers<[1], [0], [0], [1], [0, 0, 1, 1], [], []>} : vector<2x32xbf16>, vector<32x4xbf16>, vector<2x4xf32> -> vector<2x4xf32>
    %410 = arith.addf %254, %142 : vector<2x32xf32>
    %411 = arith.truncf %410 : vector<2x32xf32> to vector<2x32xbf16>
    %cst_102 = arith.constant dense<0.000000e+00> : vector<2x32xf32>
    %412 = tpu.matmul %411, %20, %cst_102 {dimension_numbers = #tpu.dot_dimension_numbers<[1], [0], [0], [1], [0, 0, 1, 1], [], []>} : vector<2x32xbf16>, vector<32x32xbf16>, vector<2x32xf32> -> vector<2x32xf32>
    %413 = arith.addf %412, %23 : vector<2x32xf32>
    %414 = math.tanh %413 : vector<2x32xf32>
    %415 = vector.broadcast %24 : vector<1x32xf32> to vector<2x32xf32>
    %416 = arith.mulf %414, %415 : vector<2x32xf32>
    %cst_103 = arith.constant dense<0.000000e+00> : vector<2xf32>
    %417 = vector.multi_reduction <add>, %416, %cst_103 [1] : vector<2x32xf32> to vector<2xf32>
    %418 = vector.shape_cast %417 : vector<2xf32> to vector<2x1xf32>
    %c5_i32_104 = arith.constant 5 : i32
    %419 = vector.broadcast %c5_i32_104 : i32 to vector<2x8xi32>
    %420 = arith.cmpi eq, %333, %419 : vector<2x8xi32>
    %421 = vector.shape_cast %418 : vector<2x1xf32> to vector<2x1xf32>
    %422 = vector.broadcast %421 : vector<2x1xf32> to vector<2x8xf32>
    %423 = arith.select %420, %422, %408 : vector<2x8xi1>, vector<2x8xf32>
    %cst_105 = arith.constant dense<0.000000e+00> : vector<2x4xf32>
    %424 = tpu.matmul %411, %25, %cst_105 {dimension_numbers = #tpu.dot_dimension_numbers<[1], [0], [0], [1], [0, 0, 1, 1], [], []>} : vector<2x32xbf16>, vector<32x4xbf16>, vector<2x4xf32> -> vector<2x4xf32>
    %425 = arith.addf %292, %104 : vector<2x32xf32>
    %426 = arith.truncf %425 : vector<2x32xf32> to vector<2x32xbf16>
    %cst_106 = arith.constant dense<0.000000e+00> : vector<2x32xf32>
    %427 = tpu.matmul %426, %20, %cst_106 {dimension_numbers = #tpu.dot_dimension_numbers<[1], [0], [0], [1], [0, 0, 1, 1], [], []>} : vector<2x32xbf16>, vector<32x32xbf16>, vector<2x32xf32> -> vector<2x32xf32>
    %428 = arith.addf %427, %23 : vector<2x32xf32>
    %429 = math.tanh %428 : vector<2x32xf32>
    %430 = vector.broadcast %24 : vector<1x32xf32> to vector<2x32xf32>
    %431 = arith.mulf %429, %430 : vector<2x32xf32>
    %cst_107 = arith.constant dense<0.000000e+00> : vector<2xf32>
    %432 = vector.multi_reduction <add>, %431, %cst_107 [1] : vector<2x32xf32> to vector<2xf32>
    %433 = vector.shape_cast %432 : vector<2xf32> to vector<2x1xf32>
    %c6_i32_108 = arith.constant 6 : i32
    %434 = vector.broadcast %c6_i32_108 : i32 to vector<2x8xi32>
    %435 = arith.cmpi eq, %333, %434 : vector<2x8xi32>
    %436 = vector.shape_cast %433 : vector<2x1xf32> to vector<2x1xf32>
    %437 = vector.broadcast %436 : vector<2x1xf32> to vector<2x8xf32>
    %438 = arith.select %435, %437, %423 : vector<2x8xi1>, vector<2x8xf32>
    %cst_109 = arith.constant dense<0.000000e+00> : vector<2x4xf32>
    %439 = tpu.matmul %426, %25, %cst_109 {dimension_numbers = #tpu.dot_dimension_numbers<[1], [0], [0], [1], [0, 0, 1, 1], [], []>} : vector<2x32xbf16>, vector<32x4xbf16>, vector<2x4xf32> -> vector<2x4xf32>
    %440 = arith.addf %330, %66 : vector<2x32xf32>
    %441 = arith.truncf %440 : vector<2x32xf32> to vector<2x32xbf16>
    %cst_110 = arith.constant dense<0.000000e+00> : vector<2x32xf32>
    %442 = tpu.matmul %441, %20, %cst_110 {dimension_numbers = #tpu.dot_dimension_numbers<[1], [0], [0], [1], [0, 0, 1, 1], [], []>} : vector<2x32xbf16>, vector<32x32xbf16>, vector<2x32xf32> -> vector<2x32xf32>
    %443 = arith.addf %442, %23 : vector<2x32xf32>
    %444 = math.tanh %443 : vector<2x32xf32>
    %445 = vector.broadcast %24 : vector<1x32xf32> to vector<2x32xf32>
    %446 = arith.mulf %444, %445 : vector<2x32xf32>
    %cst_111 = arith.constant dense<0.000000e+00> : vector<2xf32>
    %447 = vector.multi_reduction <add>, %446, %cst_111 [1] : vector<2x32xf32> to vector<2xf32>
    %448 = vector.shape_cast %447 : vector<2xf32> to vector<2x1xf32>
    %c7_i32_112 = arith.constant 7 : i32
    %449 = vector.broadcast %c7_i32_112 : i32 to vector<2x8xi32>
    %450 = arith.cmpi eq, %333, %449 : vector<2x8xi32>
    %451 = vector.shape_cast %448 : vector<2x1xf32> to vector<2x1xf32>
    %452 = vector.broadcast %451 : vector<2x1xf32> to vector<2x8xf32>
    %453 = arith.select %450, %452, %438 : vector<2x8xi1>, vector<2x8xf32>
    %cst_113 = arith.constant dense<0.000000e+00> : vector<2x4xf32>
    %454 = tpu.matmul %441, %25, %cst_113 {dimension_numbers = #tpu.dot_dimension_numbers<[1], [0], [0], [1], [0, 0, 1, 1], [], []>} : vector<2x32xbf16>, vector<32x4xbf16>, vector<2x4xf32> -> vector<2x4xf32>
    %455 = vector.broadcast %0 : vector<2x1xi32> to vector<2x8xi32>
    %456 = arith.cmpi slt, %333, %455 : vector<2x8xi32>
    %cst_114 = arith.constant 0xFF800000 : f32
    %457 = vector.broadcast %cst_114 : f32 to vector<2x8xf32>
    %458 = arith.select %456, %453, %457 : vector<2x8xi1>, vector<2x8xf32>
    %cst_115 = arith.constant dense<0xFF800000> : vector<2xf32>
    %459 = vector.multi_reduction <maximumf>, %458, %cst_115 [1] : vector<2x8xf32> to vector<2xf32>
    %460 = vector.shape_cast %459 : vector<2xf32> to vector<2x1xf32>
    %cst_116 = arith.constant -1.000000e+30 : f32
    %461 = vector.broadcast %cst_116 : f32 to vector<2x1xf32>
    %462 = arith.maximumf %460, %461 : vector<2x1xf32>
    %463 = vector.broadcast %462 : vector<2x1xf32> to vector<2x8xf32>
    %464 = arith.subf %458, %463 : vector<2x8xf32>
    %465 = math.exp %464 : vector<2x8xf32>
    %cst_117 = arith.constant dense<0.000000e+00> : vector<2xf32>
    %466 = vector.multi_reduction <add>, %465, %cst_117 [1] : vector<2x8xf32> to vector<2xf32>
    %467 = vector.shape_cast %466 : vector<2xf32> to vector<2x1xf32>
    %cst_118 = arith.constant 1.000000e-30 : f32
    %468 = vector.broadcast %cst_118 : f32 to vector<2x1xf32>
    %469 = arith.maximumf %467, %468 : vector<2x1xf32>
    %470 = tpu.reciprocal %469 {approx = true} : vector<2x1xf32> -> vector<2x1xf32>
    %471 = arith.mulf %469, %470 : vector<2x1xf32>
    %cst_119 = arith.constant 2.000000e+00 : f32
    %472 = vector.broadcast %cst_119 : f32 to vector<2x1xf32>
    %473 = arith.subf %472, %471 : vector<2x1xf32>
    %474 = arith.mulf %470, %473 : vector<2x1xf32>
    %475 = vector.broadcast %474 : vector<2x1xf32> to vector<2x8xf32>
    %476 = arith.mulf %465, %475 : vector<2x8xf32>
    %c0_120 = arith.constant 0 : index
    %c0_121 = arith.constant 0 : index
    %477 = vector.load %arg13[%c0_120, %c0_121] : memref<2x8xf32, #tpu.memory_space<vmem>>, vector<2x8xf32>
    tpu.vector_store %arg13[%c0_120, %c0_121], %476 {strides = array<i32>} : memref<2x8xf32, #tpu.memory_space<vmem>>, vector<2x8xf32>,
    %478 = vector.extract_strided_slice %476 {offsets = [0, 0], sizes = [2, 1], strides = [1, 1]} : vector<2x8xf32> to vector<2x1xf32>
    %479 = vector.broadcast %478 : vector<2x1xf32> to vector<2x4xf32>
    %480 = arith.mulf %479, %349 : vector<2x4xf32>
    %481 = arith.addf %28, %480 : vector<2x4xf32>
    %482 = vector.extract_strided_slice %476 {offsets = [0, 1], sizes = [2, 1], strides = [1, 1]} : vector<2x8xf32> to vector<2x1xf32>
    %483 = vector.broadcast %482 : vector<2x1xf32> to vector<2x4xf32>
    %484 = arith.mulf %483, %364 : vector<2x4xf32>
    %485 = arith.addf %481, %484 : vector<2x4xf32>
    %486 = vector.extract_strided_slice %476 {offsets = [0, 2], sizes = [2, 1], strides = [1, 1]} : vector<2x8xf32> to vector<2x1xf32>
    %487 = vector.broadcast %486 : vector<2x1xf32> to vector<2x4xf32>
    %488 = arith.mulf %487, %379 : vector<2x4xf32>
    %489 = arith.addf %485, %488 : vector<2x4xf32>
    %490 = vector.extract_strided_slice %476 {offsets = [0, 3], sizes = [2, 1], strides = [1, 1]} : vector<2x8xf32> to vector<2x1xf32>
    %491 = vector.broadcast %490 : vector<2x1xf32> to vector<2x4xf32>
    %492 = arith.mulf %491, %394 : vector<2x4xf32>
    %493 = arith.addf %489, %492 : vector<2x4xf32>
    %494 = vector.extract_strided_slice %476 {offsets = [0, 4], sizes = [2, 1], strides = [1, 1]} : vector<2x8xf32> to vector<2x1xf32>
    %495 = vector.broadcast %494 : vector<2x1xf32> to vector<2x4xf32>
    %496 = arith.mulf %495, %409 : vector<2x4xf32>
    %497 = arith.addf %493, %496 : vector<2x4xf32>
    %498 = vector.extract_strided_slice %476 {offsets = [0, 5], sizes = [2, 1], strides = [1, 1]} : vector<2x8xf32> to vector<2x1xf32>
    %499 = vector.broadcast %498 : vector<2x1xf32> to vector<2x4xf32>
    %500 = arith.mulf %499, %424 : vector<2x4xf32>
    %501 = arith.addf %497, %500 : vector<2x4xf32>
    %502 = vector.extract_strided_slice %476 {offsets = [0, 6], sizes = [2, 1], strides = [1, 1]} : vector<2x8xf32> to vector<2x1xf32>
    %503 = vector.broadcast %502 : vector<2x1xf32> to vector<2x4xf32>
    %504 = arith.mulf %503, %439 : vector<2x4xf32>
    %505 = arith.addf %501, %504 : vector<2x4xf32>
    %506 = vector.extract_strided_slice %476 {offsets = [0, 7], sizes = [2, 1], strides = [1, 1]} : vector<2x8xf32> to vector<2x1xf32>
    %507 = vector.broadcast %506 : vector<2x1xf32> to vector<2x4xf32>
    %508 = arith.mulf %507, %454 : vector<2x4xf32>
    %509 = arith.addf %505, %508 : vector<2x4xf32>
    %c0_122 = arith.constant 0 : index
    %c0_123 = arith.constant 0 : index
    %510 = vector.load %arg12[%c0_122, %c0_123] : memref<2x4xf32, #tpu.memory_space<vmem>>, vector<2x4xf32>
    tpu.vector_store %arg12[%c0_122, %c0_123], %509 {strides = array<i32>} : memref<2x4xf32, #tpu.memory_space<vmem>>, vector<2x4xf32>,
    return
  }
}

</mosaic_0001>

<llo_original>
// kernel: sentence_attention_forward.1
$region0: #{sentence_attention_forward.1}
  #allocation0 [shape = 'u32[]', space=smem, size = 0x4, offset = 0x4, fixed_abs, tag = 'smem constant byte address 0x4 - core index']
  #allocation1 [shape = 'u32[144,128]{1,0:T(1,128)}', space=vmem, size = 0x12000, scoped, tag = 'internal scratch']
  %s0 = inlined_call_operand.vmem [shape: s32[2,1], index: 0, kind: input, shape index: {}]
  %s1 = inlined_call_operand.vmem [shape: f32[16,32], index: 1, kind: input, shape index: {}]
  %s2 = inlined_call_operand.vmem [shape: bf16[32,96], index: 2, kind: input, shape index: {}]
  %s3 = inlined_call_operand.vmem [shape: f32[1,96], index: 3, kind: input, shape index: {}]
  %s4 = inlined_call_operand.vmem [shape: bf16[32,96], index: 4, kind: input, shape index: {}]
  %s5 = inlined_call_operand.vmem [shape: f32[1,96], index: 5, kind: input, shape index: {}]
  %s6 = inlined_call_operand.vmem [shape: bf16[32,32], index: 6, kind: input, shape index: {}]
  %s7 = inlined_call_operand.vmem [shape: f32[1,32], index: 7, kind: input, shape index: {}]
  %s8 = inlined_call_operand.vmem [shape: f32[1,32], index: 8, kind: input, shape index: {}]
  %s9 = inlined_call_operand.vmem [shape: bf16[32,4], index: 9, kind: input, shape index: {}]
  %s10 = inlined_call_operand.vmem [shape: f32[1,4], index: 10, kind: input, shape index: {}]
  %s11 = inlined_call_operand.vmem [shape: f32[1,96], index: 11, kind: input, shape index: {}]
  %s12 = inlined_call_operand.hbm [shape: f32[2,4], index: 12, kind: output, shape index: {0}]
  %s13 = inlined_call_operand.hbm [shape: f32[2,8], index: 13, kind: output, shape index: {1}]
  %14 = xla_tuple %s12, %s13
  %s15 = sld [smem:[#allocation0]]
  $region66: #{sentence_attention_forward.1} parent=0
    _
  %s17 = ssub.s32 1, %s15
  %s18 = scalar_select 0, %s17, %s15
  $region1: #{sentence_attention_forward.1} parent=0
    #allocation2 [shape = 'u8[1024]{0}', space=vmem, size = 0x400, scoped, tag = 'output window, operand 0, single buffered']
    #allocation3 [shape = 's32[1]{0}', space=sflag, size = 0x4, scoped, tag = 'scoped memory for sentence_attention_forward.1']
    #allocation4 [shape = 'u8[1024]{0}', space=vmem, size = 0x400, scoped, tag = 'output window, operand 1, single buffered']
    #allocation5 [shape = 's32[1]{0}', space=sflag, size = 0x4, scoped, tag = 'scoped memory for sentence_attention_forward.1']
    %19 = vsyncpa [#allocation3], 0
    %20 = vsyncpa [#allocation5], 0
    // Predicated region
    $region2: #{sentence_attention_forward.1} parent=1 // pred_check
      _
    $region3: #{sentence_attention_forward.1} parent=1 // pred_check_branch
      %22 = sbr.rel (0) target = $region5
    $region4: #{sentence_attention_forward.1} parent=1 // pred_region
      _
    $region5: #{sentence_attention_forward.1} parent=1 // pred_fallthru
      _
    // Predicated region
    $region6: #{sentence_attention_forward.1} parent=1 // pred_check
      _
    $region7: #{sentence_attention_forward.1} parent=1 // pred_check_branch
      %24 = sbr.rel (0) target = $region9
    $region8: #{sentence_attention_forward.1} parent=1 // pred_region
      _
    $region9: #{sentence_attention_forward.1} parent=1 // pred_fallthru
      _
    // Predicated region
    $region10: #{sentence_attention_forward.1} parent=1 // pred_check
      _
    $region11: #{sentence_attention_forward.1} parent=1 // pred_check_branch
      %26 = sbr.rel (0) target = $region13
    $region12: #{sentence_attention_forward.1} parent=1 // pred_region
      _
    $region13: #{sentence_attention_forward.1} parent=1 // pred_fallthru
      _
    // Predicated region
    $region14: #{sentence_attention_forward.1} parent=1 // pred_check
      _
    $region15: #{sentence_attention_forward.1} parent=1 // pred_check_branch
      %28 = sbr.rel (0) target = $region17
    $region16: #{sentence_attention_forward.1} parent=1 // pred_region
      _
    $region17: #{sentence_attention_forward.1} parent=1 // pred_fallthru
      _
    // Predicated region
    $region18: #{sentence_attention_forward.1} parent=1 // pred_check
      _
    $region19: #{sentence_attention_forward.1} parent=1 // pred_check_branch
      %30 = sbr.rel (0) target = $region21
    $region20: #{sentence_attention_forward.1} parent=1 // pred_region
      _
    $region21: #{sentence_attention_forward.1} parent=1 // pred_fallthru
      _
    // Predicated region
    $region22: #{sentence_attention_forward.1} parent=1 // pred_check
      _
    $region23: #{sentence_attention_forward.1} parent=1 // pred_check_branch
      %32 = sbr.rel (0) target = $region25
    $region24: #{sentence_attention_forward.1} parent=1 // pred_region
      _
    $region25: #{sentence_attention_forward.1} parent=1 // pred_fallthru
      _
    // Predicated region
    $region26: #{sentence_attention_forward.1} parent=1 // pred_check
      _
    $region27: #{sentence_attention_forward.1} parent=1 // pred_check_branch
      %34 = sbr.rel (0) target = $region29
    $region28: #{sentence_attention_forward.1} parent=1 // pred_region
      _
    $region29: #{sentence_attention_forward.1} parent=1 // pred_fallthru
      _
    // Predicated region
    $region30: #{sentence_attention_forward.1} parent=1 // pred_check
      _
    $region31: #{sentence_attention_forward.1} parent=1 // pred_check_branch
      %36 = sbr.rel (0) target = $region33
    $region32: #{sentence_attention_forward.1} parent=1 // pred_region
      _
    $region33: #{sentence_attention_forward.1} parent=1 // pred_fallthru
      _
    // Predicated region
    $region34: #{sentence_attention_forward.1} parent=1 // pred_check
      _
    $region35: #{sentence_attention_forward.1} parent=1 // pred_check_branch
      %38 = sbr.rel (0) target = $region37
    $region36: #{sentence_attention_forward.1} parent=1 // pred_region
      _
    $region37: #{sentence_attention_forward.1} parent=1 // pred_fallthru
      _
    // Predicated region
    $region38: #{sentence_attention_forward.1} parent=1 // pred_check
      _
    $region39: #{sentence_attention_forward.1} parent=1 // pred_check_branch
      %40 = sbr.rel (0) target = $region41
    $region40: #{sentence_attention_forward.1} parent=1 // pred_region
      _
    $region41: #{sentence_attention_forward.1} parent=1 // pred_fallthru
      _
    // Predicated region
    $region42: #{sentence_attention_forward.1} parent=1 // pred_check
      _
    $region43: #{sentence_attention_forward.1} parent=1 // pred_check_branch
      %42 = sbr.rel (0) target = $region45
    $region44: #{sentence_attention_forward.1} parent=1 // pred_region
      _
    $region45: #{sentence_attention_forward.1} parent=1 // pred_fallthru
      _
    // Predicated region
    $region46: #{sentence_attention_forward.1} parent=1 // pred_check
      _
    $region47: #{sentence_attention_forward.1} parent=1 // pred_check_branch
      %44 = sbr.rel (0) target = $region49
    $region48: #{sentence_attention_forward.1} parent=1 // pred_region
      _
    $region49: #{sentence_attention_forward.1} parent=1 // pred_fallthru
      _
    %v46 = vld [vmem:[%s0] sm:$0x3]
    %v47 = vld [vmem:[%s1] sm:$0xff]
    %v48 = vld [vmem:[%s1 + $0x8] sm:$0xff]
    %v49 = vpack.c.bf16 %v48, %v47
    %v50 = vld [vmem:[%s2] sm:$0xf]
    %v51 = vld [vmem:[%s2 + $0x4] sm:$0xf]
    %v52 = vld [vmem:[%s2 + $0x8] sm:$0xf]
    %v53 = vld [vmem:[%s2 + $0xc] sm:$0xf]
    %v54 = vld [vmem:[%s3] sm:$0x1]
    %v56 = vlaneseq
    %v57 = vshrl.u32 %v56, 7
    %v58 = vsub.s32 0, %v57
    %v59 = vrot.slane %v54, %v58
    %v65 = vunpack.c.l.b16 %v50
    %v66 = vunpack.c.l.b16 %v51
    %v67 = vunpack.c.l.b16 %v52
    %v68 = vunpack.c.l.b16 %v53
    %v69 = vpack.c.b16 %v66, %v65
    %v70 = vpack.c.b16 %v68, %v67
    %vm73 = vcmask 261120
    %v75 = vsel %vm73, %v49, 0
    %77 = vmatprep.subr.bf16.mxu0 0
    %78 = vmatpush1.bf16.msra.mxu0 0
    %79 = vmatprep.subr.bf16.mxu0 0
    %80 = vmatpush1.bf16.msra.mxu0 0
    %81 = vmatprep.subr.bf16.mxu0 0
    %82 = vmatpush1.bf16.msra.mxu0 0
    %83 = vmatprep.subr.bf16.mxu0 0
    %84 = vmatpush1.bf16.msra.mxu0 0
    %85 = vmatprep.subr.bf16.mxu0 0
    %86 = vmatpush1.bf16.msra.mxu0 0
    %87 = vmatprep.subr.bf16.mxu0 0
    %88 = vmatpush1.bf16.msra.mxu0 0
    %89 = vmatprep.subr.bf16.mxu0 0
    %90 = vmatpush1.bf16.msra.mxu0 %v70
    %91 = vmatprep.subr.bf16.mxu0 0
    %92 = vmatpush1.bf16.msra.mxu0 %v69
    %93 = vmatprep.subr.bf16.mxu0 0
    %94 = vmatpush2.bf16.msra.mxu0 0
    %95 = vmatprep.subr.bf16.mxu0 0
    %96 = vmatpush2.bf16.msra.mxu0 0
    %97 = vmatprep.subr.bf16.mxu0 0
    %98 = vmatpush2.bf16.msra.mxu0 0
    %99 = vmatprep.subr.bf16.mxu0 0
    %100 = vmatpush2.bf16.msra.mxu0 0
    %101 = vmatprep.subr.bf16.mxu0 0
    %102 = vmatpush2.bf16.msra.mxu0 0
    %103 = vmatprep.subr.bf16.mxu0 0
    %104 = vmatpush2.bf16.msra.mxu0 0
    %105 = vmatprep.subr.bf16.mxu0 0
    %106 = vmatpush2.bf16.msra.mxu0 0
    %107 = vmatprep.subr.bf16.mxu0 0
    %108 = vmatpush2.bf16.msra.mxu0 0
    %109 = vmatprep.mubr.bf16.mxu0 0
    %110 = vmatmul.mubr.bf16.gmra.mxu0 %v75
    %v111 = vpop.f32.mrf.mxu0
    %v112 = vadd.f32 %v59, %v111
    %v113 = vpop.f32.mrf.mxu0
    %v114 = vpop.f32.mrf.mxu0
    %v115 = vadd.f32 %v59, %v114
    %v116 = vpop.f32.mrf.mxu0
    %117 = vdwg.mxu0
    %v118 = vld [vmem:[%s4] sm:$0xf]
    %v119 = vld [vmem:[%s4 + $0x4] sm:$0xf]
    %v120 = vld [vmem:[%s4 + $0x8] sm:$0xf]
    %v121 = vld [vmem:[%s4 + $0xc] sm:$0xf]
    %v122 = vld [vmem:[%s5] sm:$0x1]
    %v124 = vlaneseq
    %v125 = vshrl.u32 %v124, 7
    %v126 = vsub.s32 0, %v125
    %v127 = vrot.slane %v122, %v126
    %v129 = vld [vmem:[%s11] sm:$0x1]
    %vm130 = vcmp.ne.f32.partialorder %v129, 0.0
    %v131 = vsel %vm130, 1, 0
    %v132 = vlaneseq
    %v133 = vshrl.u32 %v132, 7
    %v134 = vsub.s32 0, %v133
    %v135 = vrot.slane %v131, %v134
    %vm136 = vcmp.eq.s32.totalorder %v135, 1
    %v137 = vlaneseq
    %v138 = vand.u32 %v137, 127
    %vm139 = vcmp.lt.s32.totalorder %v138, 16
    %v140 = vld [vmem:[%s6] sm:$0xf]
    %v141 = vld [vmem:[%s6 + $0x4] sm:$0xf]
    %v142 = vld [vmem:[%s6 + $0x8] sm:$0xf]
    %v143 = vld [vmem:[%s6 + $0xc] sm:$0xf]
    %v144 = vld [vmem:[%s7] sm:$0x1]
    %v146 = vlaneseq
    %v147 = vshrl.u32 %v146, 7
    %v148 = vsub.s32 0, %v147
    %v149 = vrot.slane %v144, %v148
    %v151 = vld [vmem:[%s8] sm:$0x1]
    %v152 = vld [vmem:[%s9] sm:$0xf]
    %v153 = vld [vmem:[%s9 + $0x4] sm:$0xf]
    %v154 = vld [vmem:[%s9 + $0x8] sm:$0xf]
    %v155 = vld [vmem:[%s9 + $0xc] sm:$0xf]
    %v156 = vld [vmem:[%s10] sm:$0x1]
    %v158 = vlaneseq
    %v159 = vshrl.u32 %v158, 7
    %v160 = vsub.s32 0, %v159
    %v161 = vrot.slane %v156, %v160
    %v164 = vrot.slane %v115, 6
    %v166 = vsel %vm136, %v112, %v164
    %v171 = vunpack.c.l.b16 %v118
    %v172 = vunpack.c.l.b16 %v119
    %v173 = vunpack.c.l.b16 %v120
    %v174 = vunpack.c.l.b16 %v121
    %v175 = vpack.c.b16 %v172, %v171
    %v176 = vpack.c.b16 %v174, %v173
    %v180 = vsel %vm73, 0, 0
    %182 = vmatprep.subr.bf16.mxu0 0
    %183 = vmatpush1.bf16.msra.mxu0 0
    %184 = vmatprep.subr.bf16.mxu0 0
    %185 = vmatpush1.bf16.msra.mxu0 0
    %186 = vmatprep.subr.bf16.mxu0 0
    %187 = vmatpush1.bf16.msra.mxu0 0
    %188 = vmatprep.subr.bf16.mxu0 0
    %189 = vmatpush1.bf16.msra.mxu0 0
    %190 = vmatprep.subr.bf16.mxu0 0
    %191 = vmatpush1.bf16.msra.mxu0 0
    %192 = vmatprep.subr.bf16.mxu0 0
    %193 = vmatpush1.bf16.msra.mxu0 0
    %194 = vmatprep.subr.bf16.mxu0 0
    %195 = vmatpush1.bf16.msra.mxu0 %v176
    %196 = vmatprep.subr.bf16.mxu0 0
    %197 = vmatpush1.bf16.msra.mxu0 %v175
    %198 = vmatprep.subr.bf16.mxu0 0
    %199 = vmatpush2.bf16.msra.mxu0 0
    %200 = vmatprep.subr.bf16.mxu0 0
    %201 = vmatpush2.bf16.msra.mxu0 0
    %202 = vmatprep.subr.bf16.mxu0 0
    %203 = vmatpush2.bf16.msra.mxu0 0
    %204 = vmatprep.subr.bf16.mxu0 0
    %205 = vmatpush2.bf16.msra.mxu0 0
    %206 = vmatprep.subr.bf16.mxu0 0
    %207 = vmatpush2.bf16.msra.mxu0 0
    %208 = vmatprep.subr.bf16.mxu0 0
    %209 = vmatpush2.bf16.msra.mxu0 0
    %210 = vmatprep.subr.bf16.mxu0 0
    %211 = vmatpush2.bf16.msra.mxu0 0
    %212 = vmatprep.subr.bf16.mxu0 0
    %213 = vmatpush2.bf16.msra.mxu0 0
    %214 = vmatprep.mubr.bf16.mxu0 0
    %215 = vmatmul.mubr.bf16.gmra.mxu0 %v180
    %v216 = vpop.f32.mrf.mxu0
    %v217 = vadd.f32 %v127, %v216
    %v218 = vpop.f32.mrf.mxu0
    %v219 = vpop.f32.mrf.mxu0
    %v220 = vpop.f32.mrf.mxu0
    %221 = vdwg.mxu0
    %v222 = vadd.f32 %v166, %v217
    %v223 = vxor.u32 %v222, 2147483648
    %v224 = vmul.f32 %v223, 1.442695
    %v225 = vpow.pop %v224
    %v226 = vadd.f32 %v225, 1.0
    %v227 = vrcp.pop %v226
    %v228 = vmul.f32 1.0, %v227
    %230 = vrot.lane.b32.xlu0 %v217, 64
    %v231 = vpop.permute.xlu0 %230
    %v233 = vmul.f32 %v228, %v231
    %235 = vrot.lane.b32.xlu0 %v233, 64
    %v236 = vpop.permute.xlu0 %235
    %v238 = vadd.f32 %v166, %v236
    %v239 = vtanh.pop %v238
    %v240 = vsub.f32 1.0, %v228
    %242 = vrot.lane.b32.xlu0 %v239, 96
    %v243 = vpop.permute.xlu0 %242
    %v245 = vmul.f32 %v240, %v243
    %v246 = vmul.f32 %v228, 0.0
    %v247 = vadd.f32 %v245, %v246
    %v248 = vsel %vm139, 0, 7
    %249 = vset.pattern.permute.xlu0 0
    %250 = vperm.xlu0 %249, %v46
    %v251 = vpop.permute.xlu0 %250
    %vm252 = vcmp.lt.s32.totalorder %v248, %v251
    %254 = vrot.lane.b32.xlu0 %v247, 96
    %v255 = vpop.permute.xlu0 %254
    %v257 = vsel %vm252, %v255, 0.0
    %v258 = vsel %vm139, %v257, 0.0
    %v259 = vsel %vm139, 0.0, %v257
    %v260 = vrot.slane %v115, 2
    %v262 = vsel %vm136, %v112, %v260
    %v263 = vpack.c.bf16 %v257, %v257
    %v265 = vsel %vm73, %v263, 0
    %267 = vmatprep.subr.bf16.mxu0 0
    %268 = vmatpush1.bf16.msra.mxu0 0
    %269 = vmatprep.subr.bf16.mxu0 0
    %270 = vmatpush1.bf16.msra.mxu0 0
    %271 = vmatprep.subr.bf16.mxu0 0
    %272 = vmatpush1.bf16.msra.mxu0 0
    %273 = vmatprep.subr.bf16.mxu0 0
    %274 = vmatpush1.bf16.msra.mxu0 0
    %275 = vmatprep.subr.bf16.mxu0 0
    %276 = vmatpush1.bf16.msra.mxu0 0
    %277 = vmatprep.subr.bf16.mxu0 0
    %278 = vmatpush1.bf16.msra.mxu0 0
    %279 = vmatprep.subr.bf16.mxu0 0
    %280 = vmatpush1.bf16.msra.mxu0 %v176
    %281 = vmatprep.subr.bf16.mxu0 0
    %282 = vmatpush1.bf16.msra.mxu0 %v175
    %283 = vmatprep.subr.bf16.mxu0 0
    %284 = vmatpush2.bf16.msra.mxu0 0
    %285 = vmatprep.subr.bf16.mxu0 0
    %286 = vmatpush2.bf16.msra.mxu0 0
    %287 = vmatprep.subr.bf16.mxu0 0
    %288 = vmatpush2.bf16.msra.mxu0 0
    %289 = vmatprep.subr.bf16.mxu0 0
    %290 = vmatpush2.bf16.msra.mxu0 0
    %291 = vmatprep.subr.bf16.mxu0 0
    %292 = vmatpush2.bf16.msra.mxu0 0
    %293 = vmatprep.subr.bf16.mxu0 0
    %294 = vmatpush2.bf16.msra.mxu0 0
    %295 = vmatprep.subr.bf16.mxu0 0
    %296 = vmatpush2.bf16.msra.mxu0 0
    %297 = vmatprep.subr.bf16.mxu0 0
    %298 = vmatpush2.bf16.msra.mxu0 0
    %299 = vmatprep.mubr.bf16.mxu0 0
    %300 = vmatmul.mubr.bf16.gmra.mxu0 %v265
    %v301 = vpop.f32.mrf.mxu0
    %v302 = vadd.f32 %v127, %v301
    %v303 = vpop.f32.mrf.mxu0
    %v304 = vpop.f32.mrf.mxu0
    %v305 = vpop.f32.mrf.mxu0
    %306 = vdwg.mxu0
    %v308 = vrot.slane %v302, 6
    %v310 = vadd.f32 %v262, %v308
    %v311 = vxor.u32 %v310, 2147483648
    %v312 = vmul.f32 %v311, 1.442695
    %v313 = vpow.pop %v312
    %v314 = vadd.f32 %v313, 1.0
    %v315 = vrcp.pop %v314
    %v316 = vmul.f32 1.0, %v315
    %317 = vrot.lane.b32.xlu0 %v308, 64
    %v318 = vpop.permute.xlu0 %317
    %v320 = vmul.f32 %v316, %v318
    %322 = vrot.lane.b32.xlu0 %v320, 64
    %v323 = vpop.permute.xlu0 %322
    %v325 = vadd.f32 %v262, %v323
    %v326 = vtanh.pop %v325
    %v327 = vsub.f32 1.0, %v316
    %329 = vrot.lane.b32.xlu0 %v326, 96
    %v330 = vpop.permute.xlu0 %329
    %v332 = vmul.f32 %v327, %v330
    %v334 = vrot.slane %v257, 6
    %335 = vrot.lane.b32.xlu0 %v334, 32
    %v336 = vpop.permute.xlu0 %335
    %v338 = vmul.f32 %v316, %v336
    %v339 = vadd.f32 %v332, %v338
    %v340 = vsel %vm139, 1, 6
    %vm341 = vcmp.lt.s32.totalorder %v340, %v251
    %v343 = vrot.slane %v339, 2
    %344 = vrot.lane.b32.xlu0 %v343, 96
    %v345 = vpop.permute.xlu0 %344
    %v347 = vsel %vm341, %v345, 0.0
    %v348 = vsel %vm139, %v347, 0.0
    %v349 = vsel %vm139, 0.0, %v347
    %v350 = vsel %vm341, %v345, %v257
    %v351 = vpack.c.bf16 %v350, %v350
    %v353 = vsel %vm73, %v351, 0
    %355 = vmatprep.subr.bf16.mxu0 0
    %356 = vmatpush1.bf16.msra.mxu0 0
    %357 = vmatprep.subr.bf16.mxu0 0
    %358 = vmatpush1.bf16.msra.mxu0 0
    %359 = vmatprep.subr.bf16.mxu0 0
    %360 = vmatpush1.bf16.msra.mxu0 0
    %361 = vmatprep.subr.bf16.mxu0 0
    %362 = vmatpush1.bf16.msra.mxu0 0
    %363 = vmatprep.subr.bf16.mxu0 0
    %364 = vmatpush1.bf16.msra.mxu0 0
    %365 = vmatprep.subr.bf16.mxu0 0
    %366 = vmatpush1.bf16.msra.mxu0 0
    %367 = vmatprep.subr.bf16.mxu0 0
    %368 = vmatpush1.bf16.msra.mxu0 %v176
    %369 = vmatprep.subr.bf16.mxu0 0
    %370 = vmatpush1.bf16.msra.mxu0 %v175
    %371 = vmatprep.subr.bf16.mxu0 0
    %372 = vmatpush2.bf16.msra.mxu0 0
    %373 = vmatprep.subr.bf16.mxu0 0
    %374 = vmatpush2.bf16.msra.mxu0 0
    %375 = vmatprep.subr.bf16.mxu0 0
    %376 = vmatpush2.bf16.msra.mxu0 0
    %377 = vmatprep.subr.bf16.mxu0 0
    %378 = vmatpush2.bf16.msra.mxu0 0
    %379 = vmatprep.subr.bf16.mxu0 0
    %380 = vmatpush2.bf16.msra.mxu0 0
    %381 = vmatprep.subr.bf16.mxu0 0
    %382 = vmatpush2.bf16.msra.mxu0 0
    %383 = vmatprep.subr.bf16.mxu0 0
    %384 = vmatpush2.bf16.msra.mxu0 0
    %385 = vmatprep.subr.bf16.mxu0 0
    %386 = vmatpush2.bf16.msra.mxu0 0
    %387 = vmatprep.mubr.bf16.mxu0 0
    %388 = vmatmul.mubr.bf16.gmra.mxu0 %v353
    %v389 = vpop.f32.mrf.mxu0
    %v390 = vadd.f32 %v127, %v389
    %v391 = vpop.f32.mrf.mxu0
    %v392 = vpop.f32.mrf.mxu0
    %v393 = vpop.f32.mrf.mxu0
    %394 = vdwg.mxu0
    %v396 = vrot.slane %v390, 4
    %v398 = vadd.f32 %v166, %v396
    %v399 = vxor.u32 %v398, 2147483648
    %v400 = vmul.f32 %v399, 1.442695
    %v401 = vpow.pop %v400
    %v402 = vadd.f32 %v401, 1.0
    %v403 = vrcp.pop %v402
    %v404 = vmul.f32 1.0, %v403
    %405 = vrot.lane.b32.xlu0 %v396, 64
    %v406 = vpop.permute.xlu0 %405
    %v408 = vmul.f32 %v404, %v406
    %410 = vrot.lane.b32.xlu0 %v408, 64
    %v411 = vpop.permute.xlu0 %410
    %v413 = vadd.f32 %v166, %v411
    %v414 = vtanh.pop %v413
    %v415 = vsub.f32 1.0, %v404
    %417 = vrot.lane.b32.xlu0 %v414, 96
    %v418 = vpop.permute.xlu0 %417
    %v420 = vmul.f32 %v415, %v418
    %v422 = vrot.slane %v350, 4
    %423 = vrot.lane.b32.xlu0 %v422, 32
    %v424 = vpop.permute.xlu0 %423
    %v426 = vmul.f32 %v404, %v424
    %v427 = vadd.f32 %v420, %v426
    %v428 = vsel %vm139, 2, 5
    %vm429 = vcmp.lt.s32.totalorder %v428, %v251
    %v431 = vrot.slane %v427, 4
    %432 = vrot.lane.b32.xlu0 %v431, 96
    %v433 = vpop.permute.xlu0 %432
    %v435 = vsel %vm429, %v433, 0.0
    %v436 = vsel %vm139, %v435, 0.0
    %v437 = vsel %vm139, 0.0, %v435
    %v438 = vsel %vm429, %v433, %v350
    %v439 = vpack.c.bf16 %v438, %v438
    %v441 = vsel %vm73, %v439, 0
    %443 = vmatprep.subr.bf16.mxu0 0
    %444 = vmatpush1.bf16.msra.mxu0 0
    %445 = vmatprep.subr.bf16.mxu0 0
    %446 = vmatpush1.bf16.msra.mxu0 0
    %447 = vmatprep.subr.bf16.mxu0 0
    %448 = vmatpush1.bf16.msra.mxu0 0
    %449 = vmatprep.subr.bf16.mxu0 0
    %450 = vmatpush1.bf16.msra.mxu0 0
    %451 = vmatprep.subr.bf16.mxu0 0
    %452 = vmatpush1.bf16.msra.mxu0 0
    %453 = vmatprep.subr.bf16.mxu0 0
    %454 = vmatpush1.bf16.msra.mxu0 0
    %455 = vmatprep.subr.bf16.mxu0 0
    %456 = vmatpush1.bf16.msra.mxu0 %v176
    %457 = vmatprep.subr.bf16.mxu0 0
    %458 = vmatpush1.bf16.msra.mxu0 %v175
    %459 = vmatprep.subr.bf16.mxu0 0
    %460 = vmatpush2.bf16.msra.mxu0 0
    %461 = vmatprep.subr.bf16.mxu0 0
    %462 = vmatpush2.bf16.msra.mxu0 0
    %463 = vmatprep.subr.bf16.mxu0 0
    %464 = vmatpush2.bf16.msra.mxu0 0
    %465 = vmatprep.subr.bf16.mxu0 0
    %466 = vmatpush2.bf16.msra.mxu0 0
    %467 = vmatprep.subr.bf16.mxu0 0
    %468 = vmatpush2.bf16.msra.mxu0 0
    %469 = vmatprep.subr.bf16.mxu0 0
    %470 = vmatpush2.bf16.msra.mxu0 0
    %471 = vmatprep.subr.bf16.mxu0 0
    %472 = vmatpush2.bf16.msra.mxu0 0
    %473 = vmatprep.subr.bf16.mxu0 0
    %474 = vmatpush2.bf16.msra.mxu0 0
    %475 = vmatprep.mubr.bf16.mxu0 0
    %476 = vmatmul.mubr.bf16.gmra.mxu0 %v441
    %v477 = vpop.f32.mrf.mxu0
    %v478 = vadd.f32 %v127, %v477
    %v479 = vpop.f32.mrf.mxu0
    %v480 = vpop.f32.mrf.mxu0
    %v481 = vpop.f32.mrf.mxu0
    %482 = vdwg.mxu0
    %v484 = vrot.slane %v478, 2
    %v486 = vadd.f32 %v262, %v484
    %v487 = vxor.u32 %v486, 2147483648
    %v488 = vmul.f32 %v487, 1.442695
    %v489 = vpow.pop %v488
    %v490 = vadd.f32 %v489, 1.0
    %v491 = vrcp.pop %v490
    %v492 = vmul.f32 1.0, %v491
    %493 = vrot.lane.b32.xlu0 %v484, 64
    %v494 = vpop.permute.xlu0 %493
    %v496 = vmul.f32 %v492, %v494
    %498 = vrot.lane.b32.xlu0 %v496, 64
    %v499 = vpop.permute.xlu0 %498
    %v501 = vadd.f32 %v262, %v499
    %v502 = vtanh.pop %v501
    %v503 = vsub.f32 1.0, %v492
    %505 = vrot.lane.b32.xlu0 %v502, 96
    %v506 = vpop.permute.xlu0 %505
    %v508 = vmul.f32 %v503, %v506
    %v510 = vrot.slane %v438, 2
    %511 = vrot.lane.b32.xlu0 %v510, 32
    %v512 = vpop.permute.xlu0 %511
    %v514 = vmul.f32 %v492, %v512
    %v515 = vadd.f32 %v508, %v514
    %v516 = vsel %vm139, 3, 4
    %vm517 = vcmp.lt.s32.totalorder %v516, %v251
    %v519 = vrot.slane %v515, 6
    %520 = vrot.lane.b32.xlu0 %v519, 96
    %v521 = vpop.permute.xlu0 %520
    %v523 = vsel %vm517, %v521, 0.0
    %v524 = vsel %vm139, %v523, 0.0
    %v525 = vsel %vm139, 0.0, %v523
    %v526 = vsel %vm517, %v521, %v438
    %v528 = vrot.slane %v112, 6
    %v530 = vsel %vm136, %v115, %v528
    %v531 = vpack.c.bf16 %v526, %v526
    %v533 = vsel %vm73, %v531, 0
    %535 = vmatprep.subr.bf16.mxu0 0
    %536 = vmatpush1.bf16.msra.mxu0 0
    %537 = vmatprep.subr.bf16.mxu0 0
    %538 = vmatpush1.bf16.msra.mxu0 0
    %539 = vmatprep.subr.bf16.mxu0 0
    %540 = vmatpush1.bf16.msra.mxu0 0
    %541 = vmatprep.subr.bf16.mxu0 0
    %542 = vmatpush1.bf16.msra.mxu0 0
    %543 = vmatprep.subr.bf16.mxu0 0
    %544 = vmatpush1.bf16.msra.mxu0 0
    %545 = vmatprep.subr.bf16.mxu0 0
    %546 = vmatpush1.bf16.msra.mxu0 0
    %547 = vmatprep.subr.bf16.mxu0 0
    %548 = vmatpush1.bf16.msra.mxu0 %v176
    %549 = vmatprep.subr.bf16.mxu0 0
    %550 = vmatpush1.bf16.msra.mxu0 %v175
    %551 = vmatprep.subr.bf16.mxu0 0
    %552 = vmatpush2.bf16.msra.mxu0 0
    %553 = vmatprep.subr.bf16.mxu0 0
    %554 = vmatpush2.bf16.msra.mxu0 0
    %555 = vmatprep.subr.bf16.mxu0 0
    %556 = vmatpush2.bf16.msra.mxu0 0
    %557 = vmatprep.subr.bf16.mxu0 0
    %558 = vmatpush2.bf16.msra.mxu0 0
    %559 = vmatprep.subr.bf16.mxu0 0
    %560 = vmatpush2.bf16.msra.mxu0 0
    %561 = vmatprep.subr.bf16.mxu0 0
    %562 = vmatpush2.bf16.msra.mxu0 0
    %563 = vmatprep.subr.bf16.mxu0 0
    %564 = vmatpush2.bf16.msra.mxu0 0
    %565 = vmatprep.subr.bf16.mxu0 0
    %566 = vmatpush2.bf16.msra.mxu0 0
    %567 = vmatprep.mubr.bf16.mxu0 0
    %568 = vmatmul.mubr.bf16.gmra.mxu0 %v533
    %v569 = vpop.f32.mrf.mxu0
    %v570 = vadd.f32 %v127, %v569
    %v571 = vpop.f32.mrf.mxu0
    %v572 = vpop.f32.mrf.mxu0
    %v573 = vpop.f32.mrf.mxu0
    %574 = vdwg.mxu0
    %v575 = vadd.f32 %v530, %v570
    %v576 = vxor.u32 %v575, 2147483648
    %v577 = vmul.f32 %v576, 1.442695
    %v578 = vpow.pop %v577
    %v579 = vadd.f32 %v578, 1.0
    %v580 = vrcp.pop %v579
    %v581 = vmul.f32 1.0, %v580
    %583 = vrot.lane.b32.xlu0 %v570, 64
    %v584 = vpop.permute.xlu0 %583
    %v586 = vmul.f32 %v581, %v584
    %588 = vrot.lane.b32.xlu0 %v586, 64
    %v589 = vpop.permute.xlu0 %588
    %v591 = vadd.f32 %v530, %v589
    %v592 = vtanh.pop %v591
    %v593 = vsub.f32 1.0, %v581
    %595 = vrot.lane.b32.xlu0 %v592, 96
    %v596 = vpop.permute.xlu0 %595
    %v598 = vmul.f32 %v593, %v596
    %600 = vrot.lane.b32.xlu0 %v526, 32
    %v601 = vpop.permute.xlu0 %600
    %v603 = vmul.f32 %v581, %v601
    %v604 = vadd.f32 %v598, %v603
    %v605 = vsel %vm139, 4, 3
    %vm606 = vcmp.lt.s32.totalorder %v605, %v251
    %608 = vrot.lane.b32.xlu0 %v604, 96
    %v609 = vpop.permute.xlu0 %608
    %v611 = vsel %vm606, %v609, 0.0
    %v612 = vsel %vm139, %v611, 0.0
    %v613 = vsel %vm139, 0.0, %v611
    %v614 = vsel %vm606, %v609, %v526
    %v615 = vrot.slane %v112, 2
    %v617 = vsel %vm136, %v115, %v615
    %v618 = vpack.c.bf16 %v614, %v614
    %v620 = vsel %vm73, %v618, 0
    %622 = vmatprep.subr.bf16.mxu0 0
    %623 = vmatpush1.bf16.msra.mxu0 0
    %624 = vmatprep.subr.bf16.mxu0 0
    %625 = vmatpush1.bf16.msra.mxu0 0
    %626 = vmatprep.subr.bf16.mxu0 0
    %627 = vmatpush1.bf16.msra.mxu0 0
    %628 = vmatprep.subr.bf16.mxu0 0
    %629 = vmatpush1.bf16.msra.mxu0 0
    %630 = vmatprep.subr.bf16.mxu0 0
    %631 = vmatpush1.bf16.msra.mxu0 0
    %632 = vmatprep.subr.bf16.mxu0 0
    %633 = vmatpush1.bf16.msra.mxu0 0
    %634 = vmatprep.subr.bf16.mxu0 0
    %635 = vmatpush1.bf16.msra.mxu0 %v176
    %636 = vmatprep.subr.bf16.mxu0 0
    %637 = vmatpush1.bf16.msra.mxu0 %v175
    %638 = vmatprep.subr.bf16.mxu0 0
    %639 = vmatpush2.bf16.msra.mxu0 0
    %640 = vmatprep.subr.bf16.mxu0 0
    %641 = vmatpush2.bf16.msra.mxu0 0
    %642 = vmatprep.subr.bf16.mxu0 0
    %643 = vmatpush2.bf16.msra.mxu0 0
    %644 = vmatprep.subr.bf16.mxu0 0
    %645 = vmatpush2.bf16.msra.mxu0 0
    %646 = vmatprep.subr.bf16.mxu0 0
    %647 = vmatpush2.bf16.msra.mxu0 0
    %648 = vmatprep.subr.bf16.mxu0 0
    %649 = vmatpush2.bf16.msra.mxu0 0
    %650 = vmatprep.subr.bf16.mxu0 0
    %651 = vmatpush2.bf16.msra.mxu0 0
    %652 = vmatprep.subr.bf16.mxu0 0
    %653 = vmatpush2.bf16.msra.mxu0 0
    %654 = vmatprep.mubr.bf16.mxu0 0
    %655 = vmatmul.mubr.bf16.gmra.mxu0 %v620
    %v656 = vpop.f32.mrf.mxu0
    %v657 = vadd.f32 %v127, %v656
    %v658 = vpop.f32.mrf.mxu0
    %v659 = vpop.f32.mrf.mxu0
    %v660 = vpop.f32.mrf.mxu0
    %661 = vdwg.mxu0
    %v663 = vrot.slane %v657, 6
    %v665 = vadd.f32 %v617, %v663
    %v666 = vxor.u32 %v665, 2147483648
    %v667 = vmul.f32 %v666, 1.442695
    %v668 = vpow.pop %v667
    %v669 = vadd.f32 %v668, 1.0
    %v670 = vrcp.pop %v669
    %v671 = vmul.f32 1.0, %v670
    %672 = vrot.lane.b32.xlu0 %v663, 64
    %v673 = vpop.permute.xlu0 %672
    %v675 = vmul.f32 %v671, %v673
    %677 = vrot.lane.b32.xlu0 %v675, 64
    %v678 = vpop.permute.xlu0 %677
    %v680 = vadd.f32 %v617, %v678
    %v681 = vtanh.pop %v680
    %v682 = vsub.f32 1.0, %v671
    %684 = vrot.lane.b32.xlu0 %v681, 96
    %v685 = vpop.permute.xlu0 %684
    %v687 = vmul.f32 %v682, %v685
    %v689 = vrot.slane %v614, 6
    %690 = vrot.lane.b32.xlu0 %v689, 32
    %v691 = vpop.permute.xlu0 %690
    %v693 = vmul.f32 %v671, %v691
    %v694 = vadd.f32 %v687, %v693
    %v695 = vsel %vm139, 5, 2
    %vm696 = vcmp.lt.s32.totalorder %v695, %v251
    %v698 = vrot.slane %v694, 2
    %699 = vrot.lane.b32.xlu0 %v698, 96
    %v700 = vpop.permute.xlu0 %699
    %v702 = vsel %vm696, %v700, 0.0
    %v703 = vsel %vm139, %v702, 0.0
    %v704 = vsel %vm139, 0.0, %v702
    %v705 = vsel %vm696, %v700, %v614
    %v706 = vpack.c.bf16 %v705, %v705
    %v708 = vsel %vm73, %v706, 0
    %710 = vmatprep.subr.bf16.mxu0 0
    %711 = vmatpush1.bf16.msra.mxu0 0
    %712 = vmatprep.subr.bf16.mxu0 0
    %713 = vmatpush1.bf16.msra.mxu0 0
    %714 = vmatprep.subr.bf16.mxu0 0
    %715 = vmatpush1.bf16.msra.mxu0 0
    %716 = vmatprep.subr.bf16.mxu0 0
    %717 = vmatpush1.bf16.msra.mxu0 0
    %718 = vmatprep.subr.bf16.mxu0 0
    %719 = vmatpush1.bf16.msra.mxu0 0
    %720 = vmatprep.subr.bf16.mxu0 0
    %721 = vmatpush1.bf16.msra.mxu0 0
    %722 = vmatprep.subr.bf16.mxu0 0
    %723 = vmatpush1.bf16.msra.mxu0 %v176
    %724 = vmatprep.subr.bf16.mxu0 0
    %725 = vmatpush1.bf16.msra.mxu0 %v175
    %726 = vmatprep.subr.bf16.mxu0 0
    %727 = vmatpush2.bf16.msra.mxu0 0
    %728 = vmatprep.subr.bf16.mxu0 0
    %729 = vmatpush2.bf16.msra.mxu0 0
    %730 = vmatprep.subr.bf16.mxu0 0
    %731 = vmatpush2.bf16.msra.mxu0 0
    %732 = vmatprep.subr.bf16.mxu0 0
    %733 = vmatpush2.bf16.msra.mxu0 0
    %734 = vmatprep.subr.bf16.mxu0 0
    %735 = vmatpush2.bf16.msra.mxu0 0
    %736 = vmatprep.subr.bf16.mxu0 0
    %737 = vmatpush2.bf16.msra.mxu0 0
    %738 = vmatprep.subr.bf16.mxu0 0
    %739 = vmatpush2.bf16.msra.mxu0 0
    %740 = vmatprep.subr.bf16.mxu0 0
    %741 = vmatpush2.bf16.msra.mxu0 0
    %742 = vmatprep.mubr.bf16.mxu0 0
    %743 = vmatmul.mubr.bf16.gmra.mxu0 %v708
    %v744 = vpop.f32.mrf.mxu0
    %v745 = vadd.f32 %v127, %v744
    %v746 = vpop.f32.mrf.mxu0
    %v747 = vpop.f32.mrf.mxu0
    %v748 = vpop.f32.mrf.mxu0
    %749 = vdwg.mxu0
    %v751 = vrot.slane %v745, 4
    %v753 = vadd.f32 %v530, %v751
    %v754 = vxor.u32 %v753, 2147483648
    %v755 = vmul.f32 %v754, 1.442695
    %v756 = vpow.pop %v755
    %v757 = vadd.f32 %v756, 1.0
    %v758 = vrcp.pop %v757
    %v759 = vmul.f32 1.0, %v758
    %760 = vrot.lane.b32.xlu0 %v751, 64
    %v761 = vpop.permute.xlu0 %760
    %v763 = vmul.f32 %v759, %v761
    %765 = vrot.lane.b32.xlu0 %v763, 64
    %v766 = vpop.permute.xlu0 %765
    %v768 = vadd.f32 %v530, %v766
    %v769 = vtanh.pop %v768
    %v770 = vsub.f32 1.0, %v759
    %772 = vrot.lane.b32.xlu0 %v769, 96
    %v773 = vpop.permute.xlu0 %772
    %v775 = vmul.f32 %v770, %v773
    %v777 = vrot.slane %v705, 4
    %778 = vrot.lane.b32.xlu0 %v777, 32
    %v779 = vpop.permute.xlu0 %778
    %v781 = vmul.f32 %v759, %v779
    %v782 = vadd.f32 %v775, %v781
    %v783 = vsel %vm139, 6, 1
    %vm784 = vcmp.lt.s32.totalorder %v783, %v251
    %v786 = vrot.slane %v782, 4
    %787 = vrot.lane.b32.xlu0 %v786, 96
    %v788 = vpop.permute.xlu0 %787
    %v790 = vsel %vm784, %v788, 0.0
    %v791 = vsel %vm139, %v790, 0.0
    %v792 = vsel %vm139, 0.0, %v790
    %v793 = vsel %vm784, %v788, %v705
    %v794 = vpack.c.bf16 %v793, %v793
    %v796 = vsel %vm73, %v794, 0
    %798 = vmatprep.subr.bf16.mxu0 0
    %799 = vmatpush1.bf16.msra.mxu0 0
    %800 = vmatprep.subr.bf16.mxu0 0
    %801 = vmatpush1.bf16.msra.mxu0 0
    %802 = vmatprep.subr.bf16.mxu0 0
    %803 = vmatpush1.bf16.msra.mxu0 0
    %804 = vmatprep.subr.bf16.mxu0 0
    %805 = vmatpush1.bf16.msra.mxu0 0
    %806 = vmatprep.subr.bf16.mxu0 0
    %807 = vmatpush1.bf16.msra.mxu0 0
    %808 = vmatprep.subr.bf16.mxu0 0
    %809 = vmatpush1.bf16.msra.mxu0 0
    %810 = vmatprep.subr.bf16.mxu0 0
    %811 = vmatpush1.bf16.msra.mxu0 %v176
    %812 = vmatprep.subr.bf16.mxu0 0
    %813 = vmatpush1.bf16.msra.mxu0 %v175
    %814 = vmatprep.subr.bf16.mxu0 0
    %815 = vmatpush2.bf16.msra.mxu0 0
    %816 = vmatprep.subr.bf16.mxu0 0
    %817 = vmatpush2.bf16.msra.mxu0 0
    %818 = vmatprep.subr.bf16.mxu0 0
    %819 = vmatpush2.bf16.msra.mxu0 0
    %820 = vmatprep.subr.bf16.mxu0 0
    %821 = vmatpush2.bf16.msra.mxu0 0
    %822 = vmatprep.subr.bf16.mxu0 0
    %823 = vmatpush2.bf16.msra.mxu0 0
    %824 = vmatprep.subr.bf16.mxu0 0
    %825 = vmatpush2.bf16.msra.mxu0 0
    %826 = vmatprep.subr.bf16.mxu0 0
    %827 = vmatpush2.bf16.msra.mxu0 0
    %828 = vmatprep.subr.bf16.mxu0 0
    %829 = vmatpush2.bf16.msra.mxu0 0
    %830 = vmatprep.mubr.bf16.mxu0 0
    %831 = vmatmul.mubr.bf16.gmra.mxu0 %v796
    %v832 = vpop.f32.mrf.mxu0
    %v833 = vadd.f32 %v127, %v832
    %v834 = vpop.f32.mrf.mxu0
    %v835 = vpop.f32.mrf.mxu0
    %v836 = vpop.f32.mrf.mxu0
    %837 = vdwg.mxu0
    %v839 = vrot.slane %v833, 2
    %v841 = vadd.f32 %v617, %v839
    %v842 = vxor.u32 %v841, 2147483648
    %v843 = vmul.f32 %v842, 1.442695
    %v844 = vpow.pop %v843
    %v845 = vadd.f32 %v844, 1.0
    %v846 = vrcp.pop %v845
    %v847 = vmul.f32 1.0, %v846
    %848 = vrot.lane.b32.xlu0 %v839, 64
    %v849 = vpop.permute.xlu0 %848
    %v851 = vmul.f32 %v847, %v849
    %853 = vrot.lane.b32.xlu0 %v851, 64
    %v854 = vpop.permute.xlu0 %853
    %v856 = vadd.f32 %v617, %v854
    %v857 = vtanh.pop %v856
    %v858 = vsub.f32 1.0, %v847
    %860 = vrot.lane.b32.xlu0 %v857, 96
    %v861 = vpop.permute.xlu0 %860
    %v863 = vmul.f32 %v858, %v861
    %v865 = vrot.slane %v793, 2
    %866 = vrot.lane.b32.xlu0 %v865, 32
    %v867 = vpop.permute.xlu0 %866
    %v869 = vmul.f32 %v847, %v867
    %v870 = vadd.f32 %v863, %v869
    %v871 = vsel %vm139, 7, 0
    %vm872 = vcmp.lt.s32.totalorder %v871, %v251
    %v874 = vrot.slane %v870, 6
    %875 = vrot.lane.b32.xlu0 %v874, 96
    %v876 = vpop.permute.xlu0 %875
    %v878 = vsel %vm872, %v876, 0.0
    %v879 = vsel %vm139, %v878, 0.0
    %v880 = vsel %vm139, 0.0, %v878
    %v881 = vadd.f32 %v258, %v880
    %v882 = vpack.c.bf16 %v881, %v881
    %v887 = vunpack.c.l.b16 %v140
    %v888 = vunpack.c.l.b16 %v141
    %v889 = vunpack.c.l.b16 %v142
    %v890 = vunpack.c.l.b16 %v143
    %v891 = vpack.c.b16 %v888, %v887
    %v892 = vpack.c.b16 %v890, %v889
    %v896 = vsel %vm73, %v882, 0
    %898 = vmatprep.subr.bf16.mxu0 0
    %899 = vmatpush1.bf16.msra.mxu0 0
    %900 = vmatprep.subr.bf16.mxu0 0
    %901 = vmatpush1.bf16.msra.mxu0 0
    %902 = vmatprep.subr.bf16.mxu0 0
    %903 = vmatpush1.bf16.msra.mxu0 0
    %904 = vmatprep.subr.bf16.mxu0 0
    %905 = vmatpush1.bf16.msra.mxu0 0
    %906 = vmatprep.subr.bf16.mxu0 0
    %907 = vmatpush1.bf16.msra.mxu0 0
    %908 = vmatprep.subr.bf16.mxu0 0
    %909 = vmatpush1.bf16.msra.mxu0 0
    %910 = vmatprep.subr.bf16.mxu0 0
    %911 = vmatpush1.bf16.msra.mxu0 %v892
    %912 = vmatprep.subr.bf16.mxu0 0
    %913 = vmatpush1.bf16.msra.mxu0 %v891
    %914 = vmatprep.subr.bf16.mxu0 0
    %915 = vmatpush2.bf16.msra.mxu0 0
    %916 = vmatprep.subr.bf16.mxu0 0
    %917 = vmatpush2.bf16.msra.mxu0 0
    %918 = vmatprep.subr.bf16.mxu0 0
    %919 = vmatpush2.bf16.msra.mxu0 0
    %920 = vmatprep.subr.bf16.mxu0 0
    %921 = vmatpush2.bf16.msra.mxu0 0
    %922 = vmatprep.subr.bf16.mxu0 0
    %923 = vmatpush2.bf16.msra.mxu0 0
    %924 = vmatprep.subr.bf16.mxu0 0
    %925 = vmatpush2.bf16.msra.mxu0 0
    %926 = vmatprep.subr.bf16.mxu0 0
    %927 = vmatpush2.bf16.msra.mxu0 0
    %928 = vmatprep.subr.bf16.mxu0 0
    %929 = vmatpush2.bf16.msra.mxu0 0
    %930 = vmatprep.mubr.bf16.mxu0 0
    %931 = vmatmul.mubr.bf16.gmra.mxu0 %v896
    %v932 = vpop.f32.mrf.mxu0
    %v933 = vadd.f32 %v149, %v932
    %v934 = vpop.f32.mrf.mxu0
    %v935 = vpop.f32.mrf.mxu0
    %v936 = vpop.f32.mrf.mxu0
    %937 = vdwg.mxu0
    %v938 = vtanh.pop %v933
    %v940 = vlaneseq
    %v941 = vshrl.u32 %v940, 7
    %v942 = vsub.s32 0, %v941
    %v943 = vrot.slane %v151, %v942
    %v945 = vmul.f32 %v938, %v943
    %vm946 = vcmask 254976
    %v947 = vsel %vm946, %v945, 0.0
    %948 = vadd.xlane.f32.xlu0 %v947
    %v949 = vpop.xlane.xlu0 %948
    %vm950 = vcmp.eq.s32.totalorder %v138, 0
    %v951 = vsel %vm950, %v949, 0.0
    %v956 = vunpack.c.l.b16 %v152
    %v957 = vunpack.c.l.b16 %v153
    %v958 = vunpack.c.l.b16 %v154
    %v959 = vunpack.c.l.b16 %v155
    %v960 = vpack.c.b16 %v957, %v956
    %v961 = vpack.c.b16 %v959, %v958
    %964 = vmatprep.subr.bf16.mxu0 0
    %965 = vmatpush1.bf16.msra.mxu0 0
    %966 = vmatprep.subr.bf16.mxu0 0
    %967 = vmatpush1.bf16.msra.mxu0 0
    %968 = vmatprep.subr.bf16.mxu0 0
    %969 = vmatpush1.bf16.msra.mxu0 0
    %970 = vmatprep.subr.bf16.mxu0 0
    %971 = vmatpush1.bf16.msra.mxu0 0
    %972 = vmatprep.subr.bf16.mxu0 0
    %973 = vmatpush1.bf16.msra.mxu0 0
    %974 = vmatprep.subr.bf16.mxu0 0
    %975 = vmatpush1.bf16.msra.mxu0 0
    %976 = vmatprep.subr.bf16.mxu0 0
    %977 = vmatpush1.bf16.msra.mxu0 %v961
    %978 = vmatprep.subr.bf16.mxu0 0
    %979 = vmatpush1.bf16.msra.mxu0 %v960
    %980 = vmatprep.subr.bf16.mxu0 0
    %981 = vmatpush2.bf16.msra.mxu0 0
    %982 = vmatprep.subr.bf16.mxu0 0
    %983 = vmatpush2.bf16.msra.mxu0 0
    %984 = vmatprep.subr.bf16.mxu0 0
    %985 = vmatpush2.bf16.msra.mxu0 0
    %986 = vmatprep.subr.bf16.mxu0 0
    %987 = vmatpush2.bf16.msra.mxu0 0
    %988 = vmatprep.subr.bf16.mxu0 0
    %989 = vmatpush2.bf16.msra.mxu0 0
    %990 = vmatprep.subr.bf16.mxu0 0
    %991 = vmatpush2.bf16.msra.mxu0 0
    %992 = vmatprep.subr.bf16.mxu0 0
    %993 = vmatpush2.bf16.msra.mxu0 0
    %994 = vmatprep.subr.bf16.mxu0 0
    %995 = vmatpush2.bf16.msra.mxu0 0
    %996 = vmatprep.mubr.bf16.mxu0 0
    %997 = vmatmul.mubr.bf16.gmra.mxu0 %v896
    %v998 = vpop.f32.mrf.mxu0
    %v999 = vadd.f32 0.0, %v998
    %v1000 = vpop.f32.mrf.mxu0
    %v1001 = vpop.f32.mrf.mxu0
    %v1002 = vpop.f32.mrf.mxu0
    %1003 = vdwg.mxu0
    %v1004 = vadd.f32 %v348, %v792
    %v1005 = vpack.c.bf16 %v1004, %v1004
    %v1007 = vsel %vm73, %v1005, 0
    %1009 = vmatprep.subr.bf16.mxu0 0
    %1010 = vmatpush1.bf16.msra.mxu0 0
    %1011 = vmatprep.subr.bf16.mxu0 0
    %1012 = vmatpush1.bf16.msra.mxu0 0
    %1013 = vmatprep.subr.bf16.mxu0 0
    %1014 = vmatpush1.bf16.msra.mxu0 0
    %1015 = vmatprep.subr.bf16.mxu0 0
    %1016 = vmatpush1.bf16.msra.mxu0 0
    %1017 = vmatprep.subr.bf16.mxu0 0
    %1018 = vmatpush1.bf16.msra.mxu0 0
    %1019 = vmatprep.subr.bf16.mxu0 0
    %1020 = vmatpush1.bf16.msra.mxu0 0
    %1021 = vmatprep.subr.bf16.mxu0 0
    %1022 = vmatpush1.bf16.msra.mxu0 %v892
    %1023 = vmatprep.subr.bf16.mxu0 0
    %1024 = vmatpush1.bf16.msra.mxu0 %v891
    %1025 = vmatprep.subr.bf16.mxu0 0
    %1026 = vmatpush2.bf16.msra.mxu0 0
    %1027 = vmatprep.subr.bf16.mxu0 0
    %1028 = vmatpush2.bf16.msra.mxu0 0
    %1029 = vmatprep.subr.bf16.mxu0 0
    %1030 = vmatpush2.bf16.msra.mxu0 0
    %1031 = vmatprep.subr.bf16.mxu0 0
    %1032 = vmatpush2.bf16.msra.mxu0 0
    %1033 = vmatprep.subr.bf16.mxu0 0
    %1034 = vmatpush2.bf16.msra.mxu0 0
    %1035 = vmatprep.subr.bf16.mxu0 0
    %1036 = vmatpush2.bf16.msra.mxu0 0
    %1037 = vmatprep.subr.bf16.mxu0 0
    %1038 = vmatpush2.bf16.msra.mxu0 0
    %1039 = vmatprep.subr.bf16.mxu0 0
    %1040 = vmatpush2.bf16.msra.mxu0 0
    %1041 = vmatprep.mubr.bf16.mxu0 0
    %1042 = vmatmul.mubr.bf16.gmra.mxu0 %v1007
    %v1043 = vpop.f32.mrf.mxu0
    %v1044 = vadd.f32 %v149, %v1043
    %v1045 = vpop.f32.mrf.mxu0
    %v1046 = vpop.f32.mrf.mxu0
    %v1047 = vpop.f32.mrf.mxu0
    %1048 = vdwg.mxu0
    %v1049 = vtanh.pop %v1044
    %v1050 = vmul.f32 %v1049, %v943
    %v1051 = vsel %vm946, %v1050, 0.0
    %1052 = vadd.xlane.f32.xlu0 %v1051
    %v1053 = vpop.xlane.xlu0 %1052
    %vm1054 = vcmp.eq.s32.totalorder %v138, 1
    %v1055 = vsel %vm1054, %v1053, %v951
    %1056 = vmatprep.subr.bf16.mxu0 0
    %1057 = vmatpush1.bf16.msra.mxu0 0
    %1058 = vmatprep.subr.bf16.mxu0 0
    %1059 = vmatpush1.bf16.msra.mxu0 0
    %1060 = vmatprep.subr.bf16.mxu0 0
    %1061 = vmatpush1.bf16.msra.mxu0 0
    %1062 = vmatprep.subr.bf16.mxu0 0
    %1063 = vmatpush1.bf16.msra.mxu0 0
    %1064 = vmatprep.subr.bf16.mxu0 0
    %1065 = vmatpush1.bf16.msra.mxu0 0
    %1066 = vmatprep.subr.bf16.mxu0 0
    %1067 = vmatpush1.bf16.msra.mxu0 0
    %1068 = vmatprep.subr.bf16.mxu0 0
    %1069 = vmatpush1.bf16.msra.mxu0 %v961
    %1070 = vmatprep.subr.bf16.mxu0 0
    %1071 = vmatpush1.bf16.msra.mxu0 %v960
    %1072 = vmatprep.subr.bf16.mxu0 0
    %1073 = vmatpush2.bf16.msra.mxu0 0
    %1074 = vmatprep.subr.bf16.mxu0 0
    %1075 = vmatpush2.bf16.msra.mxu0 0
    %1076 = vmatprep.subr.bf16.mxu0 0
    %1077 = vmatpush2.bf16.msra.mxu0 0
    %1078 = vmatprep.subr.bf16.mxu0 0
    %1079 = vmatpush2.bf16.msra.mxu0 0
    %1080 = vmatprep.subr.bf16.mxu0 0
    %1081 = vmatpush2.bf16.msra.mxu0 0
    %1082 = vmatprep.subr.bf16.mxu0 0
    %1083 = vmatpush2.bf16.msra.mxu0 0
    %1084 = vmatprep.subr.bf16.mxu0 0
    %1085 = vmatpush2.bf16.msra.mxu0 0
    %1086 = vmatprep.subr.bf16.mxu0 0
    %1087 = vmatpush2.bf16.msra.mxu0 0
    %1088 = vmatprep.mubr.bf16.mxu0 0
    %1089 = vmatmul.mubr.bf16.gmra.mxu0 %v1007
    %v1090 = vpop.f32.mrf.mxu0
    %v1091 = vadd.f32 0.0, %v1090
    %v1092 = vpop.f32.mrf.mxu0
    %v1093 = vpop.f32.mrf.mxu0
    %v1094 = vpop.f32.mrf.mxu0
    %1095 = vdwg.mxu0
    %v1096 = vadd.f32 %v436, %v704
    %v1097 = vpack.c.bf16 %v1096, %v1096
    %v1099 = vsel %vm73, %v1097, 0
    %1101 = vmatprep.subr.bf16.mxu0 0
    %1102 = vmatpush1.bf16.msra.mxu0 0
    %1103 = vmatprep.subr.bf16.mxu0 0
    %1104 = vmatpush1.bf16.msra.mxu0 0
    %1105 = vmatprep.subr.bf16.mxu0 0
    %1106 = vmatpush1.bf16.msra.mxu0 0
    %1107 = vmatprep.subr.bf16.mxu0 0
    %1108 = vmatpush1.bf16.msra.mxu0 0
    %1109 = vmatprep.subr.bf16.mxu0 0
    %1110 = vmatpush1.bf16.msra.mxu0 0
    %1111 = vmatprep.subr.bf16.mxu0 0
    %1112 = vmatpush1.bf16.msra.mxu0 0
    %1113 = vmatprep.subr.bf16.mxu0 0
    %1114 = vmatpush1.bf16.msra.mxu0 %v892
    %1115 = vmatprep.subr.bf16.mxu0 0
    %1116 = vmatpush1.bf16.msra.mxu0 %v891
    %1117 = vmatprep.subr.bf16.mxu0 0
    %1118 = vmatpush2.bf16.msra.mxu0 0
    %1119 = vmatprep.subr.bf16.mxu0 0
    %1120 = vmatpush2.bf16.msra.mxu0 0
    %1121 = vmatprep.subr.bf16.mxu0 0
    %1122 = vmatpush2.bf16.msra.mxu0 0
    %1123 = vmatprep.subr.bf16.mxu0 0
    %1124 = vmatpush2.bf16.msra.mxu0 0
    %1125 = vmatprep.subr.bf16.mxu0 0
    %1126 = vmatpush2.bf16.msra.mxu0 0
    %1127 = vmatprep.subr.bf16.mxu0 0
    %1128 = vmatpush2.bf16.msra.mxu0 0
    %1129 = vmatprep.subr.bf16.mxu0 0
    %1130 = vmatpush2.bf16.msra.mxu0 0
    %1131 = vmatprep.subr.bf16.mxu0 0
    %1132 = vmatpush2.bf16.msra.mxu0 0
    %1133 = vmatprep.mubr.bf16.mxu0 0
    %1134 = vmatmul.mubr.bf16.gmra.mxu0 %v1099
    %v1135 = vpop.f32.mrf.mxu0
    %v1136 = vadd.f32 %v149, %v1135
    %v1137 = vpop.f32.mrf.mxu0
    %v1138 = vpop.f32.mrf.mxu0
    %v1139 = vpop.f32.mrf.mxu0
    %1140 = vdwg.mxu0
    %v1141 = vtanh.pop %v1136
    %v1142 = vmul.f32 %v1141, %v943
    %v1143 = vsel %vm946, %v1142, 0.0
    %1144 = vadd.xlane.f32.xlu0 %v1143
    %v1145 = vpop.xlane.xlu0 %1144
    %vm1146 = vcmp.eq.s32.totalorder %v138, 2
    %v1147 = vsel %vm1146, %v1145, %v1055
    %1148 = vmatprep.subr.bf16.mxu0 0
    %1149 = vmatpush1.bf16.msra.mxu0 0
    %1150 = vmatprep.subr.bf16.mxu0 0
    %1151 = vmatpush1.bf16.msra.mxu0 0
    %1152 = vmatprep.subr.bf16.mxu0 0
    %1153 = vmatpush1.bf16.msra.mxu0 0
    %1154 = vmatprep.subr.bf16.mxu0 0
    %1155 = vmatpush1.bf16.msra.mxu0 0
    %1156 = vmatprep.subr.bf16.mxu0 0
    %1157 = vmatpush1.bf16.msra.mxu0 0
    %1158 = vmatprep.subr.bf16.mxu0 0
    %1159 = vmatpush1.bf16.msra.mxu0 0
    %1160 = vmatprep.subr.bf16.mxu0 0
    %1161 = vmatpush1.bf16.msra.mxu0 %v961
    %1162 = vmatprep.subr.bf16.mxu0 0
    %1163 = vmatpush1.bf16.msra.mxu0 %v960
    %1164 = vmatprep.subr.bf16.mxu0 0
    %1165 = vmatpush2.bf16.msra.mxu0 0
    %1166 = vmatprep.subr.bf16.mxu0 0
    %1167 = vmatpush2.bf16.msra.mxu0 0
    %1168 = vmatprep.subr.bf16.mxu0 0
    %1169 = vmatpush2.bf16.msra.mxu0 0
    %1170 = vmatprep.subr.bf16.mxu0 0
    %1171 = vmatpush2.bf16.msra.mxu0 0
    %1172 = vmatprep.subr.bf16.mxu0 0
    %1173 = vmatpush2.bf16.msra.mxu0 0
    %1174 = vmatprep.subr.bf16.mxu0 0
    %1175 = vmatpush2.bf16.msra.mxu0 0
    %1176 = vmatprep.subr.bf16.mxu0 0
    %1177 = vmatpush2.bf16.msra.mxu0 0
    %1178 = vmatprep.subr.bf16.mxu0 0
    %1179 = vmatpush2.bf16.msra.mxu0 0
    %1180 = vmatprep.mubr.bf16.mxu0 0
    %1181 = vmatmul.mubr.bf16.gmra.mxu0 %v1099
    %v1182 = vpop.f32.mrf.mxu0
    %v1183 = vadd.f32 0.0, %v1182
    %v1184 = vpop.f32.mrf.mxu0
    %v1185 = vpop.f32.mrf.mxu0
    %v1186 = vpop.f32.mrf.mxu0
    %1187 = vdwg.mxu0
    %v1188 = vadd.f32 %v524, %v613
    %v1189 = vpack.c.bf16 %v1188, %v1188
    %v1191 = vsel %vm73, %v1189, 0
    %1193 = vmatprep.subr.bf16.mxu0 0
    %1194 = vmatpush1.bf16.msra.mxu0 0
    %1195 = vmatprep.subr.bf16.mxu0 0
    %1196 = vmatpush1.bf16.msra.mxu0 0
    %1197 = vmatprep.subr.bf16.mxu0 0
    %1198 = vmatpush1.bf16.msra.mxu0 0
    %1199 = vmatprep.subr.bf16.mxu0 0
    %1200 = vmatpush1.bf16.msra.mxu0 0
    %1201 = vmatprep.subr.bf16.mxu0 0
    %1202 = vmatpush1.bf16.msra.mxu0 0
    %1203 = vmatprep.subr.bf16.mxu0 0
    %1204 = vmatpush1.bf16.msra.mxu0 0
    %1205 = vmatprep.subr.bf16.mxu0 0
    %1206 = vmatpush1.bf16.msra.mxu0 %v892
    %1207 = vmatprep.subr.bf16.mxu0 0
    %1208 = vmatpush1.bf16.msra.mxu0 %v891
    %1209 = vmatprep.subr.bf16.mxu0 0
    %1210 = vmatpush2.bf16.msra.mxu0 0
    %1211 = vmatprep.subr.bf16.mxu0 0
    %1212 = vmatpush2.bf16.msra.mxu0 0
    %1213 = vmatprep.subr.bf16.mxu0 0
    %1214 = vmatpush2.bf16.msra.mxu0 0
    %1215 = vmatprep.subr.bf16.mxu0 0
    %1216 = vmatpush2.bf16.msra.mxu0 0
    %1217 = vmatprep.subr.bf16.mxu0 0
    %1218 = vmatpush2.bf16.msra.mxu0 0
    %1219 = vmatprep.subr.bf16.mxu0 0
    %1220 = vmatpush2.bf16.msra.mxu0 0
    %1221 = vmatprep.subr.bf16.mxu0 0
    %1222 = vmatpush2.bf16.msra.mxu0 0
    %1223 = vmatprep.subr.bf16.mxu0 0
    %1224 = vmatpush2.bf16.msra.mxu0 0
    %1225 = vmatprep.mubr.bf16.mxu0 0
    %1226 = vmatmul.mubr.bf16.gmra.mxu0 %v1191
    %v1227 = vpop.f32.mrf.mxu0
    %v1228 = vadd.f32 %v149, %v1227
    %v1229 = vpop.f32.mrf.mxu0
    %v1230 = vpop.f32.mrf.mxu0
    %v1231 = vpop.f32.mrf.mxu0
    %1232 = vdwg.mxu0
    %v1233 = vtanh.pop %v1228
    %v1234 = vmul.f32 %v1233, %v943
    %v1235 = vsel %vm946, %v1234, 0.0
    %1236 = vadd.xlane.f32.xlu0 %v1235
    %v1237 = vpop.xlane.xlu0 %1236
    %vm1238 = vcmp.eq.s32.totalorder %v138, 3
    %v1239 = vsel %vm1238, %v1237, %v1147
    %1240 = vmatprep.subr.bf16.mxu0 0
    %1241 = vmatpush1.bf16.msra.mxu0 0
    %1242 = vmatprep.subr.bf16.mxu0 0
    %1243 = vmatpush1.bf16.msra.mxu0 0
    %1244 = vmatprep.subr.bf16.mxu0 0
    %1245 = vmatpush1.bf16.msra.mxu0 0
    %1246 = vmatprep.subr.bf16.mxu0 0
    %1247 = vmatpush1.bf16.msra.mxu0 0
    %1248 = vmatprep.subr.bf16.mxu0 0
    %1249 = vmatpush1.bf16.msra.mxu0 0
    %1250 = vmatprep.subr.bf16.mxu0 0
    %1251 = vmatpush1.bf16.msra.mxu0 0
    %1252 = vmatprep.subr.bf16.mxu0 0
    %1253 = vmatpush1.bf16.msra.mxu0 %v961
    %1254 = vmatprep.subr.bf16.mxu0 0
    %1255 = vmatpush1.bf16.msra.mxu0 %v960
    %1256 = vmatprep.subr.bf16.mxu0 0
    %1257 = vmatpush2.bf16.msra.mxu0 0
    %1258 = vmatprep.subr.bf16.mxu0 0
    %1259 = vmatpush2.bf16.msra.mxu0 0
    %1260 = vmatprep.subr.bf16.mxu0 0
    %1261 = vmatpush2.bf16.msra.mxu0 0
    %1262 = vmatprep.subr.bf16.mxu0 0
    %1263 = vmatpush2.bf16.msra.mxu0 0
    %1264 = vmatprep.subr.bf16.mxu0 0
    %1265 = vmatpush2.bf16.msra.mxu0 0
    %1266 = vmatprep.subr.bf16.mxu0 0
    %1267 = vmatpush2.bf16.msra.mxu0 0
    %1268 = vmatprep.subr.bf16.mxu0 0
    %1269 = vmatpush2.bf16.msra.mxu0 0
    %1270 = vmatprep.subr.bf16.mxu0 0
    %1271 = vmatpush2.bf16.msra.mxu0 0
    %1272 = vmatprep.mubr.bf16.mxu0 0
    %1273 = vmatmul.mubr.bf16.gmra.mxu0 %v1191
    %v1274 = vpop.f32.mrf.mxu0
    %v1275 = vadd.f32 0.0, %v1274
    %v1276 = vpop.f32.mrf.mxu0
    %v1277 = vpop.f32.mrf.mxu0
    %v1278 = vpop.f32.mrf.mxu0
    %1279 = vdwg.mxu0
    %v1280 = vadd.f32 %v612, %v525
    %v1281 = vpack.c.bf16 %v1280, %v1280
    %v1283 = vsel %vm73, %v1281, 0
    %1285 = vmatprep.subr.bf16.mxu0 0
    %1286 = vmatpush1.bf16.msra.mxu0 0
    %1287 = vmatprep.subr.bf16.mxu0 0
    %1288 = vmatpush1.bf16.msra.mxu0 0
    %1289 = vmatprep.subr.bf16.mxu0 0
    %1290 = vmatpush1.bf16.msra.mxu0 0
    %1291 = vmatprep.subr.bf16.mxu0 0
    %1292 = vmatpush1.bf16.msra.mxu0 0
    %1293 = vmatprep.subr.bf16.mxu0 0
    %1294 = vmatpush1.bf16.msra.mxu0 0
    %1295 = vmatprep.subr.bf16.mxu0 0
    %1296 = vmatpush1.bf16.msra.mxu0 0
    %1297 = vmatprep.subr.bf16.mxu0 0
    %1298 = vmatpush1.bf16.msra.mxu0 %v892
    %1299 = vmatprep.subr.bf16.mxu0 0
    %1300 = vmatpush1.bf16.msra.mxu0 %v891
    %1301 = vmatprep.subr.bf16.mxu0 0
    %1302 = vmatpush2.bf16.msra.mxu0 0
    %1303 = vmatprep.subr.bf16.mxu0 0
    %1304 = vmatpush2.bf16.msra.mxu0 0
    %1305 = vmatprep.subr.bf16.mxu0 0
    %1306 = vmatpush2.bf16.msra.mxu0 0
    %1307 = vmatprep.subr.bf16.mxu0 0
    %1308 = vmatpush2.bf16.msra.mxu0 0
    %1309 = vmatprep.subr.bf16.mxu0 0
    %1310 = vmatpush2.bf16.msra.mxu0 0
    %1311 = vmatprep.subr.bf16.mxu0 0
    %1312 = vmatpush2.bf16.msra.mxu0 0
    %1313 = vmatprep.subr.bf16.mxu0 0
    %1314 = vmatpush2.bf16.msra.mxu0 0
    %1315 = vmatprep.subr.bf16.mxu0 0
    %1316 = vmatpush2.bf16.msra.mxu0 0
    %1317 = vmatprep.mubr.bf16.mxu0 0
    %1318 = vmatmul.mubr.bf16.gmra.mxu0 %v1283
    %v1319 = vpop.f32.mrf.mxu0
    %v1320 = vadd.f32 %v149, %v1319
    %v1321 = vpop.f32.mrf.mxu0
    %v1322 = vpop.f32.mrf.mxu0
    %v1323 = vpop.f32.mrf.mxu0
    %1324 = vdwg.mxu0
    %v1325 = vtanh.pop %v1320
    %v1326 = vmul.f32 %v1325, %v943
    %v1327 = vsel %vm946, %v1326, 0.0
    %1328 = vadd.xlane.f32.xlu0 %v1327
    %v1329 = vpop.xlane.xlu0 %1328
    %vm1330 = vcmp.eq.s32.totalorder %v138, 4
    %v1331 = vsel %vm1330, %v1329, %v1239
    %1332 = vmatprep.subr.bf16.mxu0 0
    %1333 = vmatpush1.bf16.msra.mxu0 0
    %1334 = vmatprep.subr.bf16.mxu0 0
    %1335 = vmatpush1.bf16.msra.mxu0 0
    %1336 = vmatprep.subr.bf16.mxu0 0
    %1337 = vmatpush1.bf16.msra.mxu0 0
    %1338 = vmatprep.subr.bf16.mxu0 0
    %1339 = vmatpush1.bf16.msra.mxu0 0
    %1340 = vmatprep.subr.bf16.mxu0 0
    %1341 = vmatpush1.bf16.msra.mxu0 0
    %1342 = vmatprep.subr.bf16.mxu0 0
    %1343 = vmatpush1.bf16.msra.mxu0 0
    %1344 = vmatprep.subr.bf16.mxu0 0
    %1345 = vmatpush1.bf16.msra.mxu0 %v961
    %1346 = vmatprep.subr.bf16.mxu0 0
    %1347 = vmatpush1.bf16.msra.mxu0 %v960
    %1348 = vmatprep.subr.bf16.mxu0 0
    %1349 = vmatpush2.bf16.msra.mxu0 0
    %1350 = vmatprep.subr.bf16.mxu0 0
    %1351 = vmatpush2.bf16.msra.mxu0 0
    %1352 = vmatprep.subr.bf16.mxu0 0
    %1353 = vmatpush2.bf16.msra.mxu0 0
    %1354 = vmatprep.subr.bf16.mxu0 0
    %1355 = vmatpush2.bf16.msra.mxu0 0
    %1356 = vmatprep.subr.bf16.mxu0 0
    %1357 = vmatpush2.bf16.msra.mxu0 0
    %1358 = vmatprep.subr.bf16.mxu0 0
    %1359 = vmatpush2.bf16.msra.mxu0 0
    %1360 = vmatprep.subr.bf16.mxu0 0
    %1361 = vmatpush2.bf16.msra.mxu0 0
    %1362 = vmatprep.subr.bf16.mxu0 0
    %1363 = vmatpush2.bf16.msra.mxu0 0
    %1364 = vmatprep.mubr.bf16.mxu0 0
    %1365 = vmatmul.mubr.bf16.gmra.mxu0 %v1283
    %v1366 = vpop.f32.mrf.mxu0
    %v1367 = vadd.f32 0.0, %v1366
    %v1368 = vpop.f32.mrf.mxu0
    %v1369 = vpop.f32.mrf.mxu0
    %v1370 = vpop.f32.mrf.mxu0
    %1371 = vdwg.mxu0
    %v1372 = vadd.f32 %v703, %v437
    %v1373 = vpack.c.bf16 %v1372, %v1372
    %v1375 = vsel %vm73, %v1373, 0
    %1377 = vmatprep.subr.bf16.mxu0 0
    %1378 = vmatpush1.bf16.msra.mxu0 0
    %1379 = vmatprep.subr.bf16.mxu0 0
    %1380 = vmatpush1.bf16.msra.mxu0 0
    %1381 = vmatprep.subr.bf16.mxu0 0
    %1382 = vmatpush1.bf16.msra.mxu0 0
    %1383 = vmatprep.subr.bf16.mxu0 0
    %1384 = vmatpush1.bf16.msra.mxu0 0
    %1385 = vmatprep.subr.bf16.mxu0 0
    %1386 = vmatpush1.bf16.msra.mxu0 0
    %1387 = vmatprep.subr.bf16.mxu0 0
    %1388 = vmatpush1.bf16.msra.mxu0 0
    %1389 = vmatprep.subr.bf16.mxu0 0
    %1390 = vmatpush1.bf16.msra.mxu0 %v892
    %1391 = vmatprep.subr.bf16.mxu0 0
    %1392 = vmatpush1.bf16.msra.mxu0 %v891
    %1393 = vmatprep.subr.bf16.mxu0 0
    %1394 = vmatpush2.bf16.msra.mxu0 0
    %1395 = vmatprep.subr.bf16.mxu0 0
    %1396 = vmatpush2.bf16.msra.mxu0 0
    %1397 = vmatprep.subr.bf16.mxu0 0
    %1398 = vmatpush2.bf16.msra.mxu0 0
    %1399 = vmatprep.subr.bf16.mxu0 0
    %1400 = vmatpush2.bf16.msra.mxu0 0
    %1401 = vmatprep.subr.bf16.mxu0 0
    %1402 = vmatpush2.bf16.msra.mxu0 0
    %1403 = vmatprep.subr.bf16.mxu0 0
    %1404 = vmatpush2.bf16.msra.mxu0 0
    %1405 = vmatprep.subr.bf16.mxu0 0
    %1406 = vmatpush2.bf16.msra.mxu0 0
    %1407 = vmatprep.subr.bf16.mxu0 0
    %1408 = vmatpush2.bf16.msra.mxu0 0
    %1409 = vmatprep.mubr.bf16.mxu0 0
    %1410 = vmatmul.mubr.bf16.gmra.mxu0 %v1375
    %v1411 = vpop.f32.mrf.mxu0
    %v1412 = vadd.f32 %v149, %v1411
    %v1413 = vpop.f32.mrf.mxu0
    %v1414 = vpop.f32.mrf.mxu0
    %v1415 = vpop.f32.mrf.mxu0
    %1416 = vdwg.mxu0
    %v1417 = vtanh.pop %v1412
    %v1418 = vmul.f32 %v1417, %v943
    %v1419 = vsel %vm946, %v1418, 0.0
    %1420 = vadd.xlane.f32.xlu0 %v1419
    %v1421 = vpop.xlane.xlu0 %1420
    %vm1422 = vcmp.eq.s32.totalorder %v138, 5
    %v1423 = vsel %vm1422, %v1421, %v1331
    %1424 = vmatprep.subr.bf16.mxu0 0
    %1425 = vmatpush1.bf16.msra.mxu0 0
    %1426 = vmatprep.subr.bf16.mxu0 0
    %1427 = vmatpush1.bf16.msra.mxu0 0
    %1428 = vmatprep.subr.bf16.mxu0 0
    %1429 = vmatpush1.bf16.msra.mxu0 0
    %1430 = vmatprep.subr.bf16.mxu0 0
    %1431 = vmatpush1.bf16.msra.mxu0 0
    %1432 = vmatprep.subr.bf16.mxu0 0
    %1433 = vmatpush1.bf16.msra.mxu0 0
    %1434 = vmatprep.subr.bf16.mxu0 0
    %1435 = vmatpush1.bf16.msra.mxu0 0
    %1436 = vmatprep.subr.bf16.mxu0 0
    %1437 = vmatpush1.bf16.msra.mxu0 %v961
    %1438 = vmatprep.subr.bf16.mxu0 0
    %1439 = vmatpush1.bf16.msra.mxu0 %v960
    %1440 = vmatprep.subr.bf16.mxu0 0
    %1441 = vmatpush2.bf16.msra.mxu0 0
    %1442 = vmatprep.subr.bf16.mxu0 0
    %1443 = vmatpush2.bf16.msra.mxu0 0
    %1444 = vmatprep.subr.bf16.mxu0 0
    %1445 = vmatpush2.bf16.msra.mxu0 0
    %1446 = vmatprep.subr.bf16.mxu0 0
    %1447 = vmatpush2.bf16.msra.mxu0 0
    %1448 = vmatprep.subr.bf16.mxu0 0
    %1449 = vmatpush2.bf16.msra.mxu0 0
    %1450 = vmatprep.subr.bf16.mxu0 0
    %1451 = vmatpush2.bf16.msra.mxu0 0
    %1452 = vmatprep.subr.bf16.mxu0 0
    %1453 = vmatpush2.bf16.msra.mxu0 0
    %1454 = vmatprep.subr.bf16.mxu0 0
    %1455 = vmatpush2.bf16.msra.mxu0 0
    %1456 = vmatprep.mubr.bf16.mxu0 0
    %1457 = vmatmul.mubr.bf16.gmra.mxu0 %v1375
    %v1458 = vpop.f32.mrf.mxu0
    %v1459 = vadd.f32 0.0, %v1458
    %v1460 = vpop.f32.mrf.mxu0
    %v1461 = vpop.f32.mrf.mxu0
    %v1462 = vpop.f32.mrf.mxu0
    %1463 = vdwg.mxu0
    %v1464 = vadd.f32 %v791, %v349
    %v1465 = vpack.c.bf16 %v1464, %v1464
    %v1467 = vsel %vm73, %v1465, 0
    %1469 = vmatprep.subr.bf16.mxu0 0
    %1470 = vmatpush1.bf16.msra.mxu0 0
    %1471 = vmatprep.subr.bf16.mxu0 0
    %1472 = vmatpush1.bf16.msra.mxu0 0
    %1473 = vmatprep.subr.bf16.mxu0 0
    %1474 = vmatpush1.bf16.msra.mxu0 0
    %1475 = vmatprep.subr.bf16.mxu0 0
    %1476 = vmatpush1.bf16.msra.mxu0 0
    %1477 = vmatprep.subr.bf16.mxu0 0
    %1478 = vmatpush1.bf16.msra.mxu0 0
    %1479 = vmatprep.subr.bf16.mxu0 0
    %1480 = vmatpush1.bf16.msra.mxu0 0
    %1481 = vmatprep.subr.bf16.mxu0 0
    %1482 = vmatpush1.bf16.msra.mxu0 %v892
    %1483 = vmatprep.subr.bf16.mxu0 0
    %1484 = vmatpush1.bf16.msra.mxu0 %v891
    %1485 = vmatprep.subr.bf16.mxu0 0
    %1486 = vmatpush2.bf16.msra.mxu0 0
    %1487 = vmatprep.subr.bf16.mxu0 0
    %1488 = vmatpush2.bf16.msra.mxu0 0
    %1489 = vmatprep.subr.bf16.mxu0 0
    %1490 = vmatpush2.bf16.msra.mxu0 0
    %1491 = vmatprep.subr.bf16.mxu0 0
    %1492 = vmatpush2.bf16.msra.mxu0 0
    %1493 = vmatprep.subr.bf16.mxu0 0
    %1494 = vmatpush2.bf16.msra.mxu0 0
    %1495 = vmatprep.subr.bf16.mxu0 0
    %1496 = vmatpush2.bf16.msra.mxu0 0
    %1497 = vmatprep.subr.bf16.mxu0 0
    %1498 = vmatpush2.bf16.msra.mxu0 0
    %1499 = vmatprep.subr.bf16.mxu0 0
    %1500 = vmatpush2.bf16.msra.mxu0 0
    %1501 = vmatprep.mubr.bf16.mxu0 0
    %1502 = vmatmul.mubr.bf16.gmra.mxu0 %v1467
    %v1503 = vpop.f32.mrf.mxu0
    %v1504 = vadd.f32 %v149, %v1503
    %v1505 = vpop.f32.mrf.mxu0
    %v1506 = vpop.f32.mrf.mxu0
    %v1507 = vpop.f32.mrf.mxu0
    %1508 = vdwg.mxu0
    %v1509 = vtanh.pop %v1504
    %v1510 = vmul.f32 %v1509, %v943
    %v1511 = vsel %vm946, %v1510, 0.0
    %1512 = vadd.xlane.f32.xlu0 %v1511
    %v1513 = vpop.xlane.xlu0 %1512
    %vm1514 = vcmp.eq.s32.totalorder %v138, 6
    %v1515 = vsel %vm1514, %v1513, %v1423
    %1516 = vmatprep.subr.bf16.mxu0 0
    %1517 = vmatpush1.bf16.msra.mxu0 0
    %1518 = vmatprep.subr.bf16.mxu0 0
    %1519 = vmatpush1.bf16.msra.mxu0 0
    %1520 = vmatprep.subr.bf16.mxu0 0
    %1521 = vmatpush1.bf16.msra.mxu0 0
    %1522 = vmatprep.subr.bf16.mxu0 0
    %1523 = vmatpush1.bf16.msra.mxu0 0
    %1524 = vmatprep.subr.bf16.mxu0 0
    %1525 = vmatpush1.bf16.msra.mxu0 0
    %1526 = vmatprep.subr.bf16.mxu0 0
    %1527 = vmatpush1.bf16.msra.mxu0 0
    %1528 = vmatprep.subr.bf16.mxu0 0
    %1529 = vmatpush1.bf16.msra.mxu0 %v961
    %1530 = vmatprep.subr.bf16.mxu0 0
    %1531 = vmatpush1.bf16.msra.mxu0 %v960
    %1532 = vmatprep.subr.bf16.mxu0 0
    %1533 = vmatpush2.bf16.msra.mxu0 0
    %1534 = vmatprep.subr.bf16.mxu0 0
    %1535 = vmatpush2.bf16.msra.mxu0 0
    %1536 = vmatprep.subr.bf16.mxu0 0
    %1537 = vmatpush2.bf16.msra.mxu0 0
    %1538 = vmatprep.subr.bf16.mxu0 0
    %1539 = vmatpush2.bf16.msra.mxu0 0
    %1540 = vmatprep.subr.bf16.mxu0 0
    %1541 = vmatpush2.bf16.msra.mxu0 0
    %1542 = vmatprep.subr.bf16.mxu0 0
    %1543 = vmatpush2.bf16.msra.mxu0 0
    %1544 = vmatprep.subr.bf16.mxu0 0
    %1545 = vmatpush2.bf16.msra.mxu0 0
    %1546 = vmatprep.subr.bf16.mxu0 0
    %1547 = vmatpush2.bf16.msra.mxu0 0
    %1548 = vmatprep.mubr.bf16.mxu0 0
    %1549 = vmatmul.mubr.bf16.gmra.mxu0 %v1467
    %v1550 = vpop.f32.mrf.mxu0
    %v1551 = vadd.f32 0.0, %v1550
    %v1552 = vpop.f32.mrf.mxu0
    %v1553 = vpop.f32.mrf.mxu0
    %v1554 = vpop.f32.mrf.mxu0
    %1555 = vdwg.mxu0
    %v1556 = vadd.f32 %v879, %v259
    %v1557 = vpack.c.bf16 %v1556, %v1556
    %v1559 = vsel %vm73, %v1557, 0
    %1561 = vmatprep.subr.bf16.mxu0 0
    %1562 = vmatpush1.bf16.msra.mxu0 0
    %1563 = vmatprep.subr.bf16.mxu0 0
    %1564 = vmatpush1.bf16.msra.mxu0 0
    %1565 = vmatprep.subr.bf16.mxu0 0
    %1566 = vmatpush1.bf16.msra.mxu0 0
    %1567 = vmatprep.subr.bf16.mxu0 0
    %1568 = vmatpush1.bf16.msra.mxu0 0
    %1569 = vmatprep.subr.bf16.mxu0 0
    %1570 = vmatpush1.bf16.msra.mxu0 0
    %1571 = vmatprep.subr.bf16.mxu0 0
    %1572 = vmatpush1.bf16.msra.mxu0 0
    %1573 = vmatprep.subr.bf16.mxu0 0
    %1574 = vmatpush1.bf16.msra.mxu0 %v892
    %1575 = vmatprep.subr.bf16.mxu0 0
    %1576 = vmatpush1.bf16.msra.mxu0 %v891
    %1577 = vmatprep.subr.bf16.mxu0 0
    %1578 = vmatpush2.bf16.msra.mxu0 0
    %1579 = vmatprep.subr.bf16.mxu0 0
    %1580 = vmatpush2.bf16.msra.mxu0 0
    %1581 = vmatprep.subr.bf16.mxu0 0
    %1582 = vmatpush2.bf16.msra.mxu0 0
    %1583 = vmatprep.subr.bf16.mxu0 0
    %1584 = vmatpush2.bf16.msra.mxu0 0
    %1585 = vmatprep.subr.bf16.mxu0 0
    %1586 = vmatpush2.bf16.msra.mxu0 0
    %1587 = vmatprep.subr.bf16.mxu0 0
    %1588 = vmatpush2.bf16.msra.mxu0 0
    %1589 = vmatprep.subr.bf16.mxu0 0
    %1590 = vmatpush2.bf16.msra.mxu0 0
    %1591 = vmatprep.subr.bf16.mxu0 0
    %1592 = vmatpush2.bf16.msra.mxu0 0
    %1593 = vmatprep.mubr.bf16.mxu0 0
    %1594 = vmatmul.mubr.bf16.gmra.mxu0 %v1559
    %v1595 = vpop.f32.mrf.mxu0
    %v1596 = vadd.f32 %v149, %v1595
    %v1597 = vpop.f32.mrf.mxu0
    %v1598 = vpop.f32.mrf.mxu0
    %v1599 = vpop.f32.mrf.mxu0
    %1600 = vdwg.mxu0
    %v1601 = vtanh.pop %v1596
    %v1602 = vmul.f32 %v1601, %v943
    %v1603 = vsel %vm946, %v1602, 0.0
    %1604 = vadd.xlane.f32.xlu0 %v1603
    %v1605 = vpop.xlane.xlu0 %1604
    %vm1606 = vcmp.eq.s32.totalorder %v138, 7
    %v1607 = vsel %vm1606, %v1605, %v1515
    %1608 = vmatprep.subr.bf16.mxu0 0
    %1609 = vmatpush1.bf16.msra.mxu0 0
    %1610 = vmatprep.subr.bf16.mxu0 0
    %1611 = vmatpush1.bf16.msra.mxu0 0
    %1612 = vmatprep.subr.bf16.mxu0 0
    %1613 = vmatpush1.bf16.msra.mxu0 0
    %1614 = vmatprep.subr.bf16.mxu0 0
    %1615 = vmatpush1.bf16.msra.mxu0 0
    %1616 = vmatprep.subr.bf16.mxu0 0
    %1617 = vmatpush1.bf16.msra.mxu0 0
    %1618 = vmatprep.subr.bf16.mxu0 0
    %1619 = vmatpush1.bf16.msra.mxu0 0
    %1620 = vmatprep.subr.bf16.mxu0 0
    %1621 = vmatpush1.bf16.msra.mxu0 %v961
    %1622 = vmatprep.subr.bf16.mxu0 0
    %1623 = vmatpush1.bf16.msra.mxu0 %v960
    %1624 = vmatprep.subr.bf16.mxu0 0
    %1625 = vmatpush2.bf16.msra.mxu0 0
    %1626 = vmatprep.subr.bf16.mxu0 0
    %1627 = vmatpush2.bf16.msra.mxu0 0
    %1628 = vmatprep.subr.bf16.mxu0 0
    %1629 = vmatpush2.bf16.msra.mxu0 0
    %1630 = vmatprep.subr.bf16.mxu0 0
    %1631 = vmatpush2.bf16.msra.mxu0 0
    %1632 = vmatprep.subr.bf16.mxu0 0
    %1633 = vmatpush2.bf16.msra.mxu0 0
    %1634 = vmatprep.subr.bf16.mxu0 0
    %1635 = vmatpush2.bf16.msra.mxu0 0
    %1636 = vmatprep.subr.bf16.mxu0 0
    %1637 = vmatpush2.bf16.msra.mxu0 0
    %1638 = vmatprep.subr.bf16.mxu0 0
    %1639 = vmatpush2.bf16.msra.mxu0 0
    %1640 = vmatprep.mubr.bf16.mxu0 0
    %1641 = vmatmul.mubr.bf16.gmra.mxu0 %v1559
    %v1642 = vpop.f32.mrf.mxu0
    %v1643 = vadd.f32 0.0, %v1642
    %v1644 = vpop.f32.mrf.mxu0
    %v1645 = vpop.f32.mrf.mxu0
    %v1646 = vpop.f32.mrf.mxu0
    %1647 = vdwg.mxu0
    %vm1648 = vcmp.lt.s32.totalorder %v138, %v251
    %v1649 = vsel %vm1648, %v1607, -inf
    %vm1650 = vcmask 58368
    %v1651 = vsel %vm1650, %v1649, -inf
    %1652 = vmax.xlane.f32.xlu0 %v1651
    %v1653 = vpop.xlane.xlu0 %1652
    %v1654 = vmax.f32 %v1653, -1e+30
    %v1655 = vsub.f32 %v1649, %v1654
    %v1656 = vmul.f32 %v1655, 1.442695
    %v1657 = vpow.pop %v1656
    %v1658 = vsel %vm1650, %v1657, 0.0
    %1659 = vadd.xlane.f32.xlu0 %v1658
    %v1660 = vpop.xlane.xlu0 %1659
    %v1661 = vmax.f32 %v1660, 1e-30
    %v1662 = vrcp.pop %v1661
    %v1663 = vmul.f32 %v1661, %v1662
    %v1664 = vsub.f32 2.0, %v1663
    %v1665 = vmul.f32 %v1662, %v1664
    %v1666 = vmul.f32 %v1657, %v1665
    %1667 = vst.msk [vmem:[#allocation4] sm:$0x3] %vm1650, %v1666
    %1669 = vset.pattern.permute.xlu0 0
    %1670 = vperm.xlu0 %1669, %v1666
    %v1671 = vpop.permute.xlu0 %1670
    %v1673 = vmul.f32 %v1671, %v999
    %v1674 = vadd.f32 %v161, %v1673
    %1675 = vset.pattern.permute.xlu0 1
    %1676 = vperm.xlu0 %1675, %v1666
    %v1677 = vpop.permute.xlu0 %1676
    %v1679 = vmul.f32 %v1677, %v1091
    %v1680 = vadd.f32 %v1674, %v1679
    %1681 = vset.pattern.permute.xlu0 2
    %1682 = vperm.xlu0 %1681, %v1666
    %v1683 = vpop.permute.xlu0 %1682
    %v1685 = vmul.f32 %v1683, %v1183
    %v1686 = vadd.f32 %v1680, %v1685
    %1687 = vset.pattern.permute.xlu0 3
    %1688 = vperm.xlu0 %1687, %v1666
    %v1689 = vpop.permute.xlu0 %1688
    %v1691 = vmul.f32 %v1689, %v1275
    %v1692 = vadd.f32 %v1686, %v1691
    %1693 = vset.pattern.permute.xlu0 4
    %1694 = vperm.xlu0 %1693, %v1666
    %v1695 = vpop.permute.xlu0 %1694
    %v1697 = vmul.f32 %v1695, %v1367
    %v1698 = vadd.f32 %v1692, %v1697
    %1699 = vset.pattern.permute.xlu0 5
    %1700 = vperm.xlu0 %1699, %v1666
    %v1701 = vpop.permute.xlu0 %1700
    %v1703 = vmul.f32 %v1701, %v1459
    %v1704 = vadd.f32 %v1698, %v1703
    %1705 = vset.pattern.permute.xlu0 6
    %1706 = vperm.xlu0 %1705, %v1666
    %v1707 = vpop.permute.xlu0 %1706
    %v1709 = vmul.f32 %v1707, %v1551
    %v1710 = vadd.f32 %v1704, %v1709
    %1711 = vset.pattern.permute.xlu0 7
    %1712 = vperm.xlu0 %1711, %v1666
    %v1713 = vpop.permute.xlu0 %1712
    %v1715 = vmul.f32 %v1713, %v1643
    %v1716 = vadd.f32 %v1710, %v1715
    %vm1717 = vcmask 25600
    %1718 = vst.msk [vmem:[#allocation2] sm:$0x3] %vm1717, %v1716
    // Predicated region
    $region50: #{sentence_attention_forward.1} parent=1 // pred_check
      _
    $region51: #{sentence_attention_forward.1} parent=1 // pred_check_branch
      %1720 = sbr.rel (0) target = $region53
    $region52: #{sentence_attention_forward.1} parent=1 // pred_region
      %s1722 = ssub.s32 32, 32
      %1723 = vsyncadd [#allocation3], %s1722
      %s1725 = sshll.u32 [#allocation2], 4
      %s1726 = int_to_ptr.vmem [resolvable:$true] %s1725
      %1728 = dma.vmem_to_hbm [thread:$0]  %s1726, 32, %s12, [#allocation3]
    $region53: #{sentence_attention_forward.1} parent=1 // pred_fallthru
      _
    // Predicated region
    $region54: #{sentence_attention_forward.1} parent=1 // pred_check
      _
    $region55: #{sentence_attention_forward.1} parent=1 // pred_check_branch
      %1730 = sbr.rel (0) target = $region57
    $region56: #{sentence_attention_forward.1} parent=1 // pred_region
      %s1732 = ssub.s32 32, 32
      %1733 = vsyncadd [#allocation5], %s1732
      %s1735 = sshll.u32 [#allocation4], 4
      %s1736 = int_to_ptr.vmem [resolvable:$true] %s1735
      %1738 = dma.vmem_to_hbm [thread:$0]  %s1736, 32, %s13, [#allocation5]
    $region57: #{sentence_attention_forward.1} parent=1 // pred_fallthru
      _
    // Predicated region
    $region58: #{sentence_attention_forward.1} parent=1 // pred_check
      _
    $region59: #{sentence_attention_forward.1} parent=1 // pred_check_branch
      %1740 = sbr.rel (0) target = $region61
    $region60: #{sentence_attention_forward.1} parent=1 // pred_region
      %1741 = dma.done [#allocation3], 32
    $region61: #{sentence_attention_forward.1} parent=1 // pred_fallthru
      _
    // Predicated region
    $region62: #{sentence_attention_forward.1} parent=1 // pred_check
      _
    $region63: #{sentence_attention_forward.1} parent=1 // pred_check_branch
      %1743 = sbr.rel (0) target = $region65
    $region64: #{sentence_attention_forward.1} parent=1 // pred_region
      %1744 = dma.done [#allocation5], 32
    $region65: #{sentence_attention_forward.1} parent=1 // pred_fallthru
      _
    %1745 = vsyncpa [#allocation3], 1
    %1746 = vsyncpa [#allocation5], 1

</llo_original>
